<compile_context>
chip_gen: v7x
topology: tpu7x:2x2x1
jax: 0.10.0
libtpu: 0.0.40
codegen_flags: <defaults>
</compile_context>

<pallas_src>
import functools

import jax
import jax.numpy as jnp
from jax.experimental import pallas as pl
from jax.experimental.pallas import tpu as pltpu

EPS = 1e-8        # RMSNorm eps (PyTorch module default)
NEG_BIG = 1e30    # finite stand-in for -inf in the attention key-padding bias


def _vmem_limit_bytes():
    # ~85% of physical VMEM: ~54 MiB on v7x (64 MiB), ~109 MiB on v5e/v6e (128 MiB).
    try:
        return int(pltpu.get_tpu_info().vmem_capacity_bytes * 0.85)
    except Exception:
        return 56 * 1024 * 1024   # conservative fallback, safe on every generation


VMEM_LIMIT = _vmem_limit_bytes()


def _gelu_exact_supported():
    """Probe whether exact (erf-based) GELU lowers in Mosaic on this backend."""
    def _probe(x_ref, o_ref):
        o_ref[...] = jax.nn.gelu(x_ref[...], approximate=False)
    try:
        out = pl.pallas_call(
            _probe, out_shape=jax.ShapeDtypeStruct((8, 128), jnp.float32)
        )(jnp.zeros((8, 128), jnp.float32))
        jax.block_until_ready(out)
        return True
    except Exception:
        return False


_GELU_EXACT = _gelu_exact_supported()


def _gelu(x):
    # PyTorch nn.GELU() default is the exact erf formulation; fall back to the
    # tanh approximation only if erf has no Mosaic lowering on this backend.
    return jax.nn.gelu(x, approximate=not _GELU_EXACT)


def _rmsnorm(x, scale, d):
    # norm_x = ||x||_2 ; rms = norm_x / sqrt(d) ; out = scale * x / (rms + eps)
    rms = jnp.sqrt(jnp.sum(x * x, axis=-1, keepdims=True) * (1.0 / float(d)))
    return x * scale / (rms + EPS)


# ---------------------------------------------------------------------------
# Fused encoder stack: grid = (row_tiles, depth); activation resident in VMEM
# across the depth axis; per-layer weights streamed; ln_f fused into the last
# layer's epilogue.
# ---------------------------------------------------------------------------
def encoder_stack_kernel(x_ref, bias_ref, lnf_ref,
                         scale1_ref, w_in_ref, w_out_ref, b_out_ref,
                         scale2_ref, w1_ref, b1_ref, w2_ref, b2_ref,
                         o_ref, *, bpt, seq, n_heads, head_dim, dim):
    layer = pl.program_id(1)
    n_layers = pl.num_programs(1)

    # Layer 0: seed the resident output block with the embedded input; after
    # that, o_ref carries the running activation across the depth grid axis.
    @pl.when(layer == 0)
    def _():
        o_ref[...] = x_ref[...]

    x = o_ref[...]                                            # (bpt*T, D) f32

    # ---- x = ln_1(x) ------------------------------------------------------
    x1 = _rmsnorm(x, scale1_ref[0], dim)

    # ---- x = x + attn(x, mask) --------------------------------------------
    # Fused QKV projection; w_in columns are (head, q|k|v, hd)-major and the
    # attention scale is already folded into the Q columns (done at init).
    qkv = jnp.dot(x1.astype(jnp.bfloat16), w_in_ref[0],
                  preferred_element_type=jnp.float32)         # (bpt*T, 3D) f32

    # One contiguous 3*hd lane slice per (sequence, head) attention group
    # (instead of 3 narrow slices per head), stacked (batch-major, head-minor).
    qkv_heads = jnp.stack(
        [qkv[b * seq:(b + 1) * seq, h * 3 * head_dim:(h + 1) * 3 * head_dim]
         for b in range(bpt) for h in range(n_heads)], axis=0)  # (G, T, 3hd)
    q = qkv_heads[:, :, 0:head_dim]
    k = qkv_heads[:, :, head_dim:2 * head_dim]
    v = qkv_heads[:, :, 2 * head_dim:3 * head_dim]

    # Batched scores over all (sequence, head) groups in one einsum.
    s = jnp.einsum('gqd,gkd->gqk',
                   q.astype(jnp.bfloat16), k.astype(jnp.bfloat16),
                   preferred_element_type=jnp.float32)          # (G, T, T)
    s = s + bias_ref[...]          # additive key-padding bias: 0 real / -1e30 pad
    s = s - jnp.max(s, axis=-1, keepdims=True)
    p = jnp.exp(s)
    p = p / jnp.sum(p, axis=-1, keepdims=True)                  # exact softmax

    ctx = jnp.einsum('gqk,gkd->gqd',
                     p.astype(jnp.bfloat16), v.astype(jnp.bfloat16),
                     preferred_element_type=jnp.float32)        # (G, T, hd)

    # Merge heads back to (bpt*T, D) in the reference head-major column order.
    attn = jnp.concatenate(
        [jnp.concatenate([ctx[b * n_heads + h] for h in range(n_heads)], axis=-1)
         for b in range(bpt)], axis=0)

    attn_out = jnp.dot(attn.astype(jnp.bfloat16), w_out_ref[0],
                       preferred_element_type=jnp.float32) + b_out_ref[0]
    x2 = x1 + attn_out

    # ---- x = ln_2(x) ------------------------------------------------------
    x3 = _rmsnorm(x2, scale2_ref[0], dim)

    # ---- x = x + ffd(x)  (Linear -> Dropout(id) -> GELU -> Linear) ---------
    h1 = jnp.dot(x3.astype(jnp.bfloat16), w1_ref[0],
                 preferred_element_type=jnp.float32) + b1_ref[0]
    h1 = _gelu(h1)
    h2 = jnp.dot(h1.astype(jnp.bfloat16), w2_ref[0],
                 preferred_element_type=jnp.float32) + b2_ref[0]
    y = x3 + h2

    # Carry to the next layer; on the final layer fuse ln_f so the MLM head
    # never recomputes the RMSNorm per vocab tile.
    @pl.when(layer < n_layers - 1)
    def _():
        o_ref[...] = y

    @pl.when(layer == n_layers - 1)
    def _():
        o_ref[...] = _rmsnorm(y, lnf_ref[...], dim)


def encoder_stack(x2d, attn_bias, lnf_scale, stacked, *, batch, seq, n_heads,
                  dim, depth, row_tiles):
    BT = batch * seq
    bpt = batch // row_tiles           # whole sequences per row tile
    rows = bpt * seq
    gpt = bpt * n_heads                # attention groups per row tile
    kernel = functools.partial(encoder_stack_kernel, bpt=bpt, seq=seq,
                               n_heads=n_heads, head_dim=dim // n_heads, dim=dim)
    row2 = lambda r, l: (r, 0)
    row3 = lambda r, l: (r, 0, 0)
    const2 = lambda r, l: (0, 0)
    layer3 = lambda r, l: (l, 0, 0)
    return pl.pallas_call(
        kernel,
        out_shape=jax.ShapeDtypeStruct((BT, dim), jnp.float32),
        grid=(row_tiles, depth),
        in_specs=[
            pl.BlockSpec((rows, dim), row2),             # embedded input rows
            pl.BlockSpec((gpt, 1, seq), row3),           # additive attn bias
            pl.BlockSpec((1, dim), const2),              # ln_f scale (fused)
            pl.BlockSpec((1, 1, dim), layer3),           # ln_1 scale
            pl.BlockSpec((1, dim, 3 * dim), layer3),     # in_proj W (bf16, permuted)
            pl.BlockSpec((1, dim, dim), layer3),         # out_proj W (bf16)
            pl.BlockSpec((1, 1, dim), layer3),           # out_proj b
            pl.BlockSpec((1, 1, dim), layer3),           # ln_2 scale
            pl.BlockSpec((1, dim, 4 * dim), layer3),     # ffn W1 (bf16)
            pl.BlockSpec((1, 1, 4 * dim), layer3),       # ffn b1
            pl.BlockSpec((1, 4 * dim, dim), layer3),     # ffn W2 (bf16)
            pl.BlockSpec((1, 1, dim), layer3),           # ffn b2
        ],
        # Constant over the depth axis -> activation resident in VMEM per tile.
        out_specs=pl.BlockSpec((rows, dim), row2),
        compiler_params=pltpu.CompilerParams(
            # "parallel" row tiles -> megacore sharding on v7x; depth sequential.
            dimension_semantics=("parallel", "arbitrary"),
            vmem_limit_bytes=VMEM_LIMIT),
        # NOTE: on v6e with spare VMEM, pipeline_mode=pl.Buffered(3) on the
        # per-layer weight specs can further hide weight DMA; not applied here
        # to keep the same tiling safe on v7x's 64 MiB.
    )(x2d, attn_bias, lnf_scale,
      stacked["scale1"], stacked["w_in"], stacked["w_out"], stacked["b_out"],
      stacked["scale2"], stacked["w1"], stacked["b1"], stacked["w2"], stacked["b2"])


# ---------------------------------------------------------------------------
# Tied MLM head: (rows, D) @ (D, v_tile) per grid step, lane-dense bf16 logits.
# (ln_f already applied inside the encoder's last grid step.)
# ---------------------------------------------------------------------------
def mlm_head_kernel(x_ref, embT_ref, bias_ref, o_ref):
    logits = jnp.dot(x_ref[...].astype(jnp.bfloat16), embT_ref[...],
                     preferred_element_type=jnp.float32)      # (rows, v_tile) f32
    # Precomputed additive bias row carries the "logits[:, :, 0:3] = -inf" rule.
    o_ref[...] = (logits + bias_ref[...]).astype(o_ref.dtype)


def mlm_head(x2d, embT_pad, logit_bias, *, v_tile, row_tiles):
    BT, D = x2d.shape
    Vp = embT_pad.shape[1]
    rows = BT // row_tiles
    return pl.pallas_call(
        mlm_head_kernel,
        out_shape=jax.ShapeDtypeStruct((BT, Vp), jnp.bfloat16),   # bf16 writeback
        grid=(row_tiles, Vp // v_tile),
        in_specs=[
            pl.BlockSpec((rows, D), lambda r, v: (r, 0)),     # normed hidden rows
            pl.BlockSpec((D, v_tile), lambda r, v: (0, v)),   # tied embT tile
            pl.BlockSpec((1, v_tile), lambda r, v: (0, v)),   # -inf bias tile
        ],
        out_specs=pl.BlockSpec((rows, v_tile), lambda r, v: (r, v)),  # lane-dense
        compiler_params=pltpu.CompilerParams(
            dimension_semantics=("parallel", "parallel"),
            vmem_limit_bytes=VMEM_LIMIT),
    )(x2d, embT_pad, logit_bias)


# ---------------------------------------------------------------------------
# Parameter init (deterministic; mirrors MLMBERT._init_weights, tied head).
# ---------------------------------------------------------------------------
def make_params(key, config):
    V, L, D, depth = (config["vocab_size"], config["max_len"],
                      config["dim"], config["depth"])
    H = config["n_heads"]
    hd = D // H
    att_scale = float(hd) ** -0.5
    keys = jax.random.split(key, 2 + 4 * depth)
    n = lambda k, s: 0.02 * jax.random.normal(k, s, jnp.float32)

    emb = n(keys[0], (V, D))                 # tied: class_embedding == mlm_head
    Vp = ((V + 127) // 128) * 128            # pad vocab to a multiple of 128 lanes
    embT_pad = jnp.zeros((D, Vp), jnp.float32).at[:, :V].set(emb.T)
    logit_bias = jnp.zeros((1, Vp), jnp.float32).at[0, 0:3].set(-jnp.inf)

    def permute_w_in(w):
        # Columns (q|k|v, head, hd) -> (head, q|k|v, hd); fold att scale into Q.
        w = w.reshape(D, 3, H, hd)
        w = w.at[:, 0].multiply(att_scale)
        return jnp.transpose(w, (0, 2, 1, 3)).reshape(D, 3 * D)

    w_in, w_out, w1, w2 = [], [], [], []
    for l in range(depth):
        k0, k1, k2, k3 = keys[2 + 4 * l: 6 + 4 * l]
        w_in.append(permute_w_in(n(k0, (D, 3 * D))))
        w_out.append(n(k1, (D, D)))
        w1.append(n(k2, (D, 4 * D)))
        w2.append(n(k3, (4 * D, D)))

    return {
        "emb": emb,                                   # f32, used for the gather
        "emb_T_pad": embT_pad.astype(jnp.bfloat16),   # pre-transposed + padded
        "logit_bias": logit_bias,
        "pos": n(keys[1], (L, D)),
        "ln_f_scale": jnp.ones((1, D), jnp.float32),
        "layers": {                                    # stacked over depth
            "scale1": jnp.ones((depth, 1, D), jnp.float32),
            "w_in": jnp.stack(w_in).astype(jnp.bfloat16),
            "w_out": jnp.stack(w_out).astype(jnp.bfloat16),
            "b_out": jnp.zeros((depth, 1, D), jnp.float32),
            "scale2": jnp.ones((depth, 1, D), jnp.float32),
            "w1": jnp.stack(w1).astype(jnp.bfloat16),
            "b1": jnp.zeros((depth, 1, 4 * D), jnp.float32),
            "w2": jnp.stack(w2).astype(jnp.bfloat16),
            "b2": jnp.zeros((depth, 1, D), jnp.float32),
        },
    }


def mlm_bert_forward(input_ids, params, config):
    B, T = input_ids.shape
    D, H, V = config["dim"], config["n_heads"], config["vocab_size"]
    depth = config["depth"]
    pad_id = config["pad_token_id"]

    # Two whole-sequence row tiles (when shapes allow): parallel axis for the
    # v7x megacore and a bound on per-step intermediates; weight re-fetch x2.
    row_tiles = 2 if (B % 2 == 0 and ((B // 2) * T) % 8 == 0) else 1

    # Additive key-padding bias: 0 for real tokens, -1e30 for pads, expanded
    # per head with (batch, head)-major ordering to match the kernel's groups.
    real = input_ids != pad_id                                        # (B, T)
    key_bias = jnp.where(real, 0.0, -NEG_BIG).astype(jnp.float32)
    attn_bias = jnp.broadcast_to(key_bias[:, None, None, :],
                                 (B, H, 1, T)).reshape(B * H, 1, T)

    # Embedding: token gather + positional embedding (plain-JAX glue).
    x = jnp.take(params["emb"], input_ids, axis=0) + params["pos"][:T][None]
    x2d = x.reshape(B * T, D).astype(jnp.float32)

    x2d = encoder_stack(x2d, attn_bias, params["ln_f_scale"], params["layers"],
                        batch=B, seq=T, n_heads=H, dim=D, depth=depth,
                        row_tiles=row_tiles)

    Vp = params["emb_T_pad"].shape[1]
    v_cap = 1024 if VMEM_LIMIT > 64 * 1024 * 1024 else 512   # smaller on v7x
    v_tile = Vp
    for cand in (v_cap, 512, 256, 128):
        if Vp > cand and Vp % cand == 0:
            v_tile = cand
            break
    logits_pad = mlm_head(x2d, params["emb_T_pad"], params["logit_bias"],
                          v_tile=v_tile, row_tiles=row_tiles)
    # Drop the lane-padding vocab columns at the very end (bf16 logits).
    return logits_pad.reshape(B, T, Vp)[:, :, :V]
    # TODO(synk): the labels / cross-entropy branch needs a data-dependent
    # boolean masked gather (nonzero compaction) with no clean Pallas
    # equivalent; only the inference (labels=None) path is implemented.


if __name__ == "__main__":
    config = {
        "batch_size": 2, "dim": 32, "n_heads": 4,
        "attn_dropout": 0.1, "mlp_dropout": 0.1,   # dropout is identity (eval)
        "depth": 2, "vocab_size": 16, "max_len": 16,
        "pad_token_id": 0, "mask_token_id": 1,
    }
    key = jax.random.PRNGKey(0)
    pkey, dkey = jax.random.split(key)
    params = make_params(pkey, config)

    B, T = 2, 8
    input_ids = jax.random.randint(dkey, (B, T), 3, config["vocab_size"],
                                   dtype=jnp.int32)
    input_ids = input_ids.at[0, 3].set(config["mask_token_id"])   # exactly one <mask>
    input_ids = input_ids.at[1, 6:].set(config["pad_token_id"])   # trailing padding

    logits = mlm_bert_forward(input_ids, params, config)
    logits = jax.block_until_ready(logits)

    # labels=None branch of MLMBERT.forward: single-<mask> prediction path.
    flat_mask = (input_ids == config["mask_token_id"]).reshape(-1)
    mask_idx = int(jnp.argmax(flat_mask))
    mask_preds = jnp.argmax(
        jax.nn.softmax(logits[:, mask_idx, :].astype(jnp.float32), axis=-1), axis=-1)
    mask_preds = jax.block_until_ready(mask_preds)

    assert logits.shape == (B, T, config["vocab_size"])
    assert bool(jnp.all(jnp.isneginf(logits[:, :, 0:3])))
    assert bool(jnp.all(jnp.isfinite(logits[:, :, 3:].astype(jnp.float32))))
    print("KERNEL_OK")
</pallas_src>

<mosaic_0001>
module attributes {stable_mosaic.version = 11 : i64} {
  func.func @encoder_stack_kernel(%arg0: i32, %arg1: i32, %arg2: memref<8x32xf32, #tpu.memory_space<vmem>>, %arg3: memref<4x1x8xf32, #tpu.memory_space<vmem>>, %arg4: memref<1x32xf32, #tpu.memory_space<vmem>>, %arg5: memref<1x1x32xf32, #tpu.memory_space<vmem>>, %arg6: memref<1x32x96xbf16, #tpu.memory_space<vmem>>, %arg7: memref<1x32x32xbf16, #tpu.memory_space<vmem>>, %arg8: memref<1x1x32xf32, #tpu.memory_space<vmem>>, %arg9: memref<1x1x32xf32, #tpu.memory_space<vmem>>, %arg10: memref<1x32x128xbf16, #tpu.memory_space<vmem>>, %arg11: memref<1x1x128xf32, #tpu.memory_space<vmem>>, %arg12: memref<1x128x32xbf16, #tpu.memory_space<vmem>>, %arg13: memref<1x1x32xf32, #tpu.memory_space<vmem>>, %arg14: memref<8x32xf32, #tpu.memory_space<vmem>>) attributes {dimension_semantics = [#tpu.dimension_semantics<parallel>, #tpu.dimension_semantics<arbitrary>], iteration_bounds = array<i64: 2, 2>, scalar_prefetch = 0 : i64, scratch_operands = 0 : i64, tpu.core_type = #tpu.core_type<tc>, window_params = [{transform_indices = @transform_0, window_bounds = array<i64: 8, 32>}, {transform_indices = @transform_1, window_bounds = array<i64: 4, 1, 8>}, {pipeline_mode = #tpu.pipeline_mode<synchronous>, transform_indices = @transform_2, window_bounds = array<i64: 1, 32>}, {transform_indices = @transform_3, window_bounds = array<i64: 1, 1, 32>}, {transform_indices = @transform_4, window_bounds = array<i64: 1, 32, 96>}, {transform_indices = @transform_5, window_bounds = array<i64: 1, 32, 32>}, {transform_indices = @transform_6, window_bounds = array<i64: 1, 1, 32>}, {transform_indices = @transform_7, window_bounds = array<i64: 1, 1, 32>}, {transform_indices = @transform_8, window_bounds = array<i64: 1, 32, 128>}, {transform_indices = @transform_9, window_bounds = array<i64: 1, 1, 128>}, {transform_indices = @transform_10, window_bounds = array<i64: 1, 128, 32>}, {transform_indices = @transform_11, window_bounds = array<i64: 1, 1, 32>}, {transform_indices = @transform_12, window_bounds = array<i64: 8, 32>}]} {
    %c0_i32 = arith.constant 0 : i32
    %0 = arith.cmpi eq, %arg1, %c0_i32 : i32
    %1 = arith.extui %0 : i1 to i32
    %c0_i32_0 = arith.constant 0 : i32
    %2 = arith.cmpi ne, %1, %c0_i32_0 : i32
    scf.if %2 {
      %c0_52 = arith.constant 0 : index
      %c0_53 = arith.constant 0 : index
      %120 = vector.load %arg2[%c0_52, %c0_53] : memref<8x32xf32, #tpu.memory_space<vmem>>, vector<8x32xf32>
      %c0_54 = arith.constant 0 : index
      %c0_55 = arith.constant 0 : index
      %121 = vector.load %arg14[%c0_54, %c0_55] : memref<8x32xf32, #tpu.memory_space<vmem>>, vector<8x32xf32>
      tpu.vector_store %arg14[%c0_54, %c0_55], %120 {strides = array<i32>} : memref<8x32xf32, #tpu.memory_space<vmem>>, vector<8x32xf32>,
    } else {
    }
    %c0 = arith.constant 0 : index
    %c0_1 = arith.constant 0 : index
    %3 = vector.load %arg14[%c0, %c0_1] : memref<8x32xf32, #tpu.memory_space<vmem>>, vector<8x32xf32>
    %c0_2 = arith.constant 0 : index
    %c0_3 = arith.constant 0 : index
    %c0_4 = arith.constant 0 : index
    %4 = vector.load %arg5[%c0_2, %c0_3, %c0_4] : memref<1x1x32xf32, #tpu.memory_space<vmem>>, vector<1x1x32xf32>
    %5 = vector.shape_cast %4 : vector<1x1x32xf32> to vector<1x32xf32>
    %6 = arith.mulf %3, %3 : vector<8x32xf32>
    %cst = arith.constant dense<0.000000e+00> : vector<8xf32>
    %7 = vector.multi_reduction <add>, %6, %cst [1] : vector<8x32xf32> to vector<8xf32>
    %8 = vector.shape_cast %7 : vector<8xf32> to vector<8x1xf32>
    %cst_5 = arith.constant 3.125000e-02 : f32
    %9 = vector.broadcast %cst_5 : f32 to vector<8x1xf32>
    %10 = arith.mulf %8, %9 : vector<8x1xf32>
    %11 = math.sqrt %10 : vector<8x1xf32>
    %12 = vector.broadcast %5 : vector<1x32xf32> to vector<8x32xf32>
    %13 = arith.mulf %3, %12 : vector<8x32xf32>
    %cst_6 = arith.constant 9.99999993E-9 : f32
    %14 = vector.broadcast %cst_6 : f32 to vector<8x1xf32>
    %15 = arith.addf %11, %14 : vector<8x1xf32>
    %16 = vector.broadcast %15 : vector<8x1xf32> to vector<8x32xf32>
    %17 = arith.divf %13, %16 : vector<8x32xf32>
    %18 = arith.truncf %17 : vector<8x32xf32> to vector<8x32xbf16>
    %c0_7 = arith.constant 0 : index
    %c0_8 = arith.constant 0 : index
    %c0_9 = arith.constant 0 : index
    %19 = vector.load %arg6[%c0_7, %c0_8, %c0_9] : memref<1x32x96xbf16, #tpu.memory_space<vmem>>, vector<1x32x96xbf16>
    %20 = vector.shape_cast %19 : vector<1x32x96xbf16> to vector<32x96xbf16>
    %cst_10 = arith.constant dense<0.000000e+00> : vector<8x96xf32>
    %21 = tpu.matmul %18, %20, %cst_10 {dimension_numbers = #tpu.dot_dimension_numbers<[1], [0], [0], [1], [0, 0, 1, 1], [], []>} : vector<8x32xbf16>, vector<32x96xbf16>, vector<8x96xf32> -> vector<8x96xf32>
    %22 = vector.extract_strided_slice %21 {offsets = [0, 0], sizes = [8, 24], strides = [1, 1]} : vector<8x96xf32> to vector<8x24xf32>
    %23 = vector.extract_strided_slice %21 {offsets = [0, 24], sizes = [8, 24], strides = [1, 1]} : vector<8x96xf32> to vector<8x24xf32>
    %24 = vector.extract_strided_slice %21 {offsets = [0, 48], sizes = [8, 24], strides = [1, 1]} : vector<8x96xf32> to vector<8x24xf32>
    %25 = vector.extract_strided_slice %21 {offsets = [0, 72], sizes = [8, 24], strides = [1, 1]} : vector<8x96xf32> to vector<8x24xf32>
    %26 = vector.shape_cast %22 : vector<8x24xf32> to vector<1x8x24xf32>
    %27 = vector.shape_cast %23 : vector<8x24xf32> to vector<1x8x24xf32>
    %28 = vector.shape_cast %24 : vector<8x24xf32> to vector<1x8x24xf32>
    %29 = vector.shape_cast %25 : vector<8x24xf32> to vector<1x8x24xf32>
    %30 = tpu.concatenate %26, %27, %28, %29 in 0 : vector<1x8x24xf32>, vector<1x8x24xf32>, vector<1x8x24xf32>, vector<1x8x24xf32> -> vector<4x8x24xf32>
    %31 = vector.extract_strided_slice %30 {offsets = [0, 0, 0], sizes = [4, 8, 8], strides = [1, 1, 1]} : vector<4x8x24xf32> to vector<4x8x8xf32>
    %32 = vector.extract_strided_slice %30 {offsets = [0, 0, 8], sizes = [4, 8, 8], strides = [1, 1, 1]} : vector<4x8x24xf32> to vector<4x8x8xf32>
    %33 = vector.extract_strided_slice %30 {offsets = [0, 0, 16], sizes = [4, 8, 8], strides = [1, 1, 1]} : vector<4x8x24xf32> to vector<4x8x8xf32>
    %34 = arith.truncf %31 : vector<4x8x8xf32> to vector<4x8x8xbf16>
    %35 = arith.truncf %32 : vector<4x8x8xf32> to vector<4x8x8xbf16>
    "tpu.trace_start"() <{level = 10 : i32, message = "gqd,gkd->gqk"}> : () -> ()
    %cst_11 = arith.constant dense<0.000000e+00> : vector<4x8x8xf32>
    %36 = tpu.matmul %34, %35, %cst_11 {dimension_numbers = #tpu.dot_dimension_numbers<[2], [2], [1], [1], [0, 0, 0, 1, 1, 1], [0], [0]>} : vector<4x8x8xbf16>, vector<4x8x8xbf16>, vector<4x8x8xf32> -> vector<4x8x8xf32>
    "tpu.trace_stop"() : () -> ()
    %c0_12 = arith.constant 0 : index
    %c0_13 = arith.constant 0 : index
    %c0_14 = arith.constant 0 : index
    %37 = vector.load %arg3[%c0_12, %c0_13, %c0_14] : memref<4x1x8xf32, #tpu.memory_space<vmem>>, vector<4x1x8xf32>
    %38 = vector.broadcast %37 : vector<4x1x8xf32> to vector<4x8x8xf32>
    %39 = arith.addf %36, %38 : vector<4x8x8xf32>
    %cst_15 = arith.constant dense<0xFF800000> : vector<4x8xf32>
    %40 = vector.multi_reduction <maximumf>, %39, %cst_15 [2] : vector<4x8x8xf32> to vector<4x8xf32>
    %41 = vector.shape_cast %40 : vector<4x8xf32> to vector<4x8x1xf32>
    %42 = vector.broadcast %41 : vector<4x8x1xf32> to vector<4x8x8xf32>
    %43 = arith.subf %39, %42 : vector<4x8x8xf32>
    %44 = math.exp %43 : vector<4x8x8xf32>
    %cst_16 = arith.constant dense<0.000000e+00> : vector<4x8xf32>
    %45 = vector.multi_reduction <add>, %44, %cst_16 [2] : vector<4x8x8xf32> to vector<4x8xf32>
    %46 = vector.shape_cast %45 : vector<4x8xf32> to vector<4x8x1xf32>
    %47 = vector.broadcast %46 : vector<4x8x1xf32> to vector<4x8x8xf32>
    %48 = arith.divf %44, %47 : vector<4x8x8xf32>
    %49 = arith.truncf %48 : vector<4x8x8xf32> to vector<4x8x8xbf16>
    %50 = arith.truncf %33 : vector<4x8x8xf32> to vector<4x8x8xbf16>
    "tpu.trace_start"() <{level = 10 : i32, message = "gqk,gkd->gqd"}> : () -> ()
    %cst_17 = arith.constant dense<0.000000e+00> : vector<4x8x8xf32>
    %51 = tpu.matmul %49, %50, %cst_17 {dimension_numbers = #tpu.dot_dimension_numbers<[2], [1], [1], [2], [0, 0, 0, 1, 1, 2], [0], [0]>} : vector<4x8x8xbf16>, vector<4x8x8xbf16>, vector<4x8x8xf32> -> vector<4x8x8xf32>
    "tpu.trace_stop"() : () -> ()
    %52 = vector.extract_strided_slice %51 {offsets = [0, 0, 0], sizes = [1, 8, 8], strides = [1, 1, 1]} : vector<4x8x8xf32> to vector<1x8x8xf32>
    %53 = vector.shape_cast %52 : vector<1x8x8xf32> to vector<8x8xf32>
    %54 = vector.extract_strided_slice %51 {offsets = [1, 0, 0], sizes = [1, 8, 8], strides = [1, 1, 1]} : vector<4x8x8xf32> to vector<1x8x8xf32>
    %55 = vector.shape_cast %54 : vector<1x8x8xf32> to vector<8x8xf32>
    %56 = vector.extract_strided_slice %51 {offsets = [2, 0, 0], sizes = [1, 8, 8], strides = [1, 1, 1]} : vector<4x8x8xf32> to vector<1x8x8xf32>
    %57 = vector.shape_cast %56 : vector<1x8x8xf32> to vector<8x8xf32>
    %58 = vector.extract_strided_slice %51 {offsets = [3, 0, 0], sizes = [1, 8, 8], strides = [1, 1, 1]} : vector<4x8x8xf32> to vector<1x8x8xf32>
    %59 = vector.shape_cast %58 : vector<1x8x8xf32> to vector<8x8xf32>
    %60 = tpu.concatenate %53, %55, %57, %59 in 1 : vector<8x8xf32>, vector<8x8xf32>, vector<8x8xf32>, vector<8x8xf32> -> vector<8x32xf32>
    %61 = arith.truncf %60 : vector<8x32xf32> to vector<8x32xbf16>
    %c0_18 = arith.constant 0 : index
    %c0_19 = arith.constant 0 : index
    %c0_20 = arith.constant 0 : index
    %62 = vector.load %arg7[%c0_18, %c0_19, %c0_20] : memref<1x32x32xbf16, #tpu.memory_space<vmem>>, vector<1x32x32xbf16>
    %63 = vector.shape_cast %62 : vector<1x32x32xbf16> to vector<32x32xbf16>
    %cst_21 = arith.constant dense<0.000000e+00> : vector<8x32xf32>
    %64 = tpu.matmul %61, %63, %cst_21 {dimension_numbers = #tpu.dot_dimension_numbers<[1], [0], [0], [1], [0, 0, 1, 1], [], []>} : vector<8x32xbf16>, vector<32x32xbf16>, vector<8x32xf32> -> vector<8x32xf32>
    %c0_22 = arith.constant 0 : index
    %c0_23 = arith.constant 0 : index
    %c0_24 = arith.constant 0 : index
    %65 = vector.load %arg8[%c0_22, %c0_23, %c0_24] : memref<1x1x32xf32, #tpu.memory_space<vmem>>, vector<1x1x32xf32>
    %66 = vector.shape_cast %65 : vector<1x1x32xf32> to vector<1x32xf32>
    %67 = vector.broadcast %66 : vector<1x32xf32> to vector<8x32xf32>
    %68 = arith.addf %64, %67 : vector<8x32xf32>
    %69 = arith.addf %17, %68 : vector<8x32xf32>
    %c0_25 = arith.constant 0 : index
    %c0_26 = arith.constant 0 : index
    %c0_27 = arith.constant 0 : index
    %70 = vector.load %arg9[%c0_25, %c0_26, %c0_27] : memref<1x1x32xf32, #tpu.memory_space<vmem>>, vector<1x1x32xf32>
    %71 = vector.shape_cast %70 : vector<1x1x32xf32> to vector<1x32xf32>
    %72 = arith.mulf %69, %69 : vector<8x32xf32>
    %cst_28 = arith.constant dense<0.000000e+00> : vector<8xf32>
    %73 = vector.multi_reduction <add>, %72, %cst_28 [1] : vector<8x32xf32> to vector<8xf32>
    %74 = vector.shape_cast %73 : vector<8xf32> to vector<8x1xf32>
    %cst_29 = arith.constant 3.125000e-02 : f32
    %75 = vector.broadcast %cst_29 : f32 to vector<8x1xf32>
    %76 = arith.mulf %74, %75 : vector<8x1xf32>
    %77 = math.sqrt %76 : vector<8x1xf32>
    %78 = vector.broadcast %71 : vector<1x32xf32> to vector<8x32xf32>
    %79 = arith.mulf %69, %78 : vector<8x32xf32>
    %cst_30 = arith.constant 9.99999993E-9 : f32
    %80 = vector.broadcast %cst_30 : f32 to vector<8x1xf32>
    %81 = arith.addf %77, %80 : vector<8x1xf32>
    %82 = vector.broadcast %81 : vector<8x1xf32> to vector<8x32xf32>
    %83 = arith.divf %79, %82 : vector<8x32xf32>
    %84 = arith.truncf %83 : vector<8x32xf32> to vector<8x32xbf16>
    %c0_31 = arith.constant 0 : index
    %c0_32 = arith.constant 0 : index
    %c0_33 = arith.constant 0 : index
    %85 = vector.load %arg10[%c0_31, %c0_32, %c0_33] : memref<1x32x128xbf16, #tpu.memory_space<vmem>>, vector<1x32x128xbf16>
    %86 = vector.shape_cast %85 : vector<1x32x128xbf16> to vector<32x128xbf16>
    %cst_34 = arith.constant dense<0.000000e+00> : vector<8x128xf32>
    %87 = tpu.matmul %84, %86, %cst_34 {dimension_numbers = #tpu.dot_dimension_numbers<[1], [0], [0], [1], [0, 0, 1, 1], [], []>} : vector<8x32xbf16>, vector<32x128xbf16>, vector<8x128xf32> -> vector<8x128xf32>
    %c0_35 = arith.constant 0 : index
    %c0_36 = arith.constant 0 : index
    %c0_37 = arith.constant 0 : index
    %88 = vector.load %arg11[%c0_35, %c0_36, %c0_37] : memref<1x1x128xf32, #tpu.memory_space<vmem>>, vector<1x1x128xf32>
    %89 = vector.shape_cast %88 : vector<1x1x128xf32> to vector<1x128xf32>
    %90 = vector.broadcast %89 : vector<1x128xf32> to vector<8x128xf32>
    %91 = arith.addf %87, %90 : vector<8x128xf32>
    %92 = arith.mulf %91, %91 : vector<8x128xf32>
    %93 = arith.mulf %91, %92 : vector<8x128xf32>
    %cst_38 = arith.constant 4.471500e-02 : f32
    %94 = vector.broadcast %cst_38 : f32 to vector<8x128xf32>
    %95 = arith.mulf %94, %93 : vector<8x128xf32>
    %96 = arith.addf %91, %95 : vector<8x128xf32>
    %cst_39 = arith.constant 0.797884583 : f32
    %97 = vector.broadcast %cst_39 : f32 to vector<8x128xf32>
    %98 = arith.mulf %97, %96 : vector<8x128xf32>
    %99 = math.tanh %98 : vector<8x128xf32>
    %cst_40 = arith.constant 1.000000e+00 : f32
    %100 = vector.broadcast %cst_40 : f32 to vector<8x128xf32>
    %101 = arith.addf %100, %99 : vector<8x128xf32>
    %cst_41 = arith.constant 5.000000e-01 : f32
    %102 = vector.broadcast %cst_41 : f32 to vector<8x128xf32>
    %103 = arith.mulf %102, %101 : vector<8x128xf32>
    %104 = arith.mulf %91, %103 : vector<8x128xf32>
    %105 = arith.truncf %104 : vector<8x128xf32> to vector<8x128xbf16>
    %c0_42 = arith.constant 0 : index
    %c0_43 = arith.constant 0 : index
    %c0_44 = arith.constant 0 : index
    %106 = vector.load %arg12[%c0_42, %c0_43, %c0_44] : memref<1x128x32xbf16, #tpu.memory_space<vmem>>, vector<1x128x32xbf16>
    %107 = vector.shape_cast %106 : vector<1x128x32xbf16> to vector<128x32xbf16>
    %cst_45 = arith.constant dense<0.000000e+00> : vector<8x32xf32>
    %108 = tpu.matmul %105, %107, %cst_45 {dimension_numbers = #tpu.dot_dimension_numbers<[1], [0], [0], [1], [0, 0, 1, 1], [], []>} : vector<8x128xbf16>, vector<128x32xbf16>, vector<8x32xf32> -> vector<8x32xf32>
    %c0_46 = arith.constant 0 : index
    %c0_47 = arith.constant 0 : index
    %c0_48 = arith.constant 0 : index
    %109 = vector.load %arg13[%c0_46, %c0_47, %c0_48] : memref<1x1x32xf32, #tpu.memory_space<vmem>>, vector<1x1x32xf32>
    %110 = vector.shape_cast %109 : vector<1x1x32xf32> to vector<1x32xf32>
    %111 = vector.broadcast %110 : vector<1x32xf32> to vector<8x32xf32>
    %112 = arith.addf %108, %111 : vector<8x32xf32>
    %113 = arith.addf %83, %112 : vector<8x32xf32>
    %c1_i32 = arith.constant 1 : i32
    %114 = arith.cmpi slt, %arg1, %c1_i32 : i32
    %115 = arith.extui %114 : i1 to i32
    %c0_i32_49 = arith.constant 0 : i32
    %116 = arith.cmpi ne, %115, %c0_i32_49 : i32
    scf.if %116 {
      %c0_52 = arith.constant 0 : index
      %c0_53 = arith.constant 0 : index
      %120 = vector.load %arg14[%c0_52, %c0_53] : memref<8x32xf32, #tpu.memory_space<vmem>>, vector<8x32xf32>
      tpu.vector_store %arg14[%c0_52, %c0_53], %113 {strides = array<i32>} : memref<8x32xf32, #tpu.memory_space<vmem>>, vector<8x32xf32>,
    } else {
    }
    %c1_i32_50 = arith.constant 1 : i32
    %117 = arith.cmpi eq, %arg1, %c1_i32_50 : i32
    %118 = arith.extui %117 : i1 to i32
    %c0_i32_51 = arith.constant 0 : i32
    %119 = arith.cmpi ne, %118, %c0_i32_51 : i32
    scf.if %119 {
      %c0_52 = arith.constant 0 : index
      %c0_53 = arith.constant 0 : index
      %120 = vector.load %arg4[%c0_52, %c0_53] : memref<1x32xf32, #tpu.memory_space<vmem>>, vector<1x32xf32>
      %121 = arith.mulf %113, %113 : vector<8x32xf32>
      %cst_54 = arith.constant dense<0.000000e+00> : vector<8xf32>
      %122 = vector.multi_reduction <add>, %121, %cst_54 [1] : vector<8x32xf32> to vector<8xf32>
      %123 = vector.shape_cast %122 : vector<8xf32> to vector<8x1xf32>
      %cst_55 = arith.constant 3.125000e-02 : f32
      %124 = vector.broadcast %cst_55 : f32 to vector<8x1xf32>
      %125 = arith.mulf %123, %124 : vector<8x1xf32>
      %126 = math.sqrt %125 : vector<8x1xf32>
      %127 = vector.broadcast %120 : vector<1x32xf32> to vector<8x32xf32>
      %128 = arith.mulf %113, %127 : vector<8x32xf32>
      %cst_56 = arith.constant 9.99999993E-9 : f32
      %129 = vector.broadcast %cst_56 : f32 to vector<8x1xf32>
      %130 = arith.addf %126, %129 : vector<8x1xf32>
      %131 = vector.broadcast %130 : vector<8x1xf32> to vector<8x32xf32>
      %132 = arith.divf %128, %131 : vector<8x32xf32>
      %c0_57 = arith.constant 0 : index
      %c0_58 = arith.constant 0 : index
      %133 = vector.load %arg14[%c0_57, %c0_58] : memref<8x32xf32, #tpu.memory_space<vmem>>, vector<8x32xf32>
      tpu.vector_store %arg14[%c0_57, %c0_58], %132 {strides = array<i32>} : memref<8x32xf32, #tpu.memory_space<vmem>>, vector<8x32xf32>,
    } else {
    }
    return
  }
  func.func @transform_0(%arg0: i32, %arg1: i32) -> (i32, i32) {
    %c0_i32 = arith.constant 0 : i32
    %c0_i32_0 = arith.constant 0 : i32
    return %arg0, %c0_i32 : i32, i32
  }
  func.func @transform_1(%arg0: i32, %arg1: i32) -> (i32, i32, i32) {
    %c0_i32 = arith.constant 0 : i32
    %c0_i32_0 = arith.constant 0 : i32
    %c0_i32_1 = arith.constant 0 : i32
    return %arg0, %c0_i32, %c0_i32_0 : i32, i32, i32
  }
  func.func @transform_2(%arg0: i32, %arg1: i32) -> (i32, i32) {
    %c0_i32 = arith.constant 0 : i32
    %c0_i32_0 = arith.constant 0 : i32
    %c0_i32_1 = arith.constant 0 : i32
    return %c0_i32, %c0_i32_0 : i32, i32
  }
  func.func @transform_3(%arg0: i32, %arg1: i32) -> (i32, i32, i32) {
    %c0_i32 = arith.constant 0 : i32
    %c0_i32_0 = arith.constant 0 : i32
    %c0_i32_1 = arith.constant 0 : i32
    return %arg1, %c0_i32, %c0_i32_0 : i32, i32, i32
  }
  func.func @transform_4(%arg0: i32, %arg1: i32) -> (i32, i32, i32) {
    %c0_i32 = arith.constant 0 : i32
    %c0_i32_0 = arith.constant 0 : i32
    %c0_i32_1 = arith.constant 0 : i32
    return %arg1, %c0_i32, %c0_i32_0 : i32, i32, i32
  }
  func.func @transform_5(%arg0: i32, %arg1: i32) -> (i32, i32, i32) {
    %c0_i32 = arith.constant 0 : i32
    %c0_i32_0 = arith.constant 0 : i32
    %c0_i32_1 = arith.constant 0 : i32
    return %arg1, %c0_i32, %c0_i32_0 : i32, i32, i32
  }
  func.func @transform_6(%arg0: i32, %arg1: i32) -> (i32, i32, i32) {
    %c0_i32 = arith.constant 0 : i32
    %c0_i32_0 = arith.constant 0 : i32
    %c0_i32_1 = arith.constant 0 : i32
    return %arg1, %c0_i32, %c0_i32_0 : i32, i32, i32
  }
  func.func @transform_7(%arg0: i32, %arg1: i32) -> (i32, i32, i32) {
    %c0_i32 = arith.constant 0 : i32
    %c0_i32_0 = arith.constant 0 : i32
    %c0_i32_1 = arith.constant 0 : i32
    return %arg1, %c0_i32, %c0_i32_0 : i32, i32, i32
  }
  func.func @transform_8(%arg0: i32, %arg1: i32) -> (i32, i32, i32) {
    %c0_i32 = arith.constant 0 : i32
    %c0_i32_0 = arith.constant 0 : i32
    %c0_i32_1 = arith.constant 0 : i32
    return %arg1, %c0_i32, %c0_i32_0 : i32, i32, i32
  }
  func.func @transform_9(%arg0: i32, %arg1: i32) -> (i32, i32, i32) {
    %c0_i32 = arith.constant 0 : i32
    %c0_i32_0 = arith.constant 0 : i32
    %c0_i32_1 = arith.constant 0 : i32
    return %arg1, %c0_i32, %c0_i32_0 : i32, i32, i32
  }
  func.func @transform_10(%arg0: i32, %arg1: i32) -> (i32, i32, i32) {
    %c0_i32 = arith.constant 0 : i32
    %c0_i32_0 = arith.constant 0 : i32
    %c0_i32_1 = arith.constant 0 : i32
    return %arg1, %c0_i32, %c0_i32_0 : i32, i32, i32
  }
  func.func @transform_11(%arg0: i32, %arg1: i32) -> (i32, i32, i32) {
    %c0_i32 = arith.constant 0 : i32
    %c0_i32_0 = arith.constant 0 : i32
    %c0_i32_1 = arith.constant 0 : i32
    return %arg1, %c0_i32, %c0_i32_0 : i32, i32, i32
  }
  func.func @transform_12(%arg0: i32, %arg1: i32) -> (i32, i32) {
    %c0_i32 = arith.constant 0 : i32
    %c0_i32_0 = arith.constant 0 : i32
    return %arg0, %c0_i32 : i32, i32
  }
}

</mosaic_0001>

<llo_original>
// kernel: tpu_custom_call.1
$region0: #{tpu_custom_call.1}
  #allocation0 [shape = 'u32[]', space=smem, size = 0x4, offset = 0x4, fixed_abs, tag = 'smem constant byte address 0x4 - core index']
  #allocation1 [shape = 'u32[144,128]{1,0:T(1,128)}', space=vmem, size = 0x12000, scoped, tag = 'internal scratch']
  %s0 = inlined_call_operand.vmem [shape: f32[16,32], index: 0, kind: input, shape index: {}]
  %s1 = inlined_call_operand.vmem [shape: f32[8,1,8], index: 1, kind: input, shape index: {}]
  %s2 = inlined_call_operand.vmem [shape: f32[1,32], index: 2, kind: input, shape index: {}]
  %s3 = inlined_call_operand.vmem [shape: f32[2,1,32], index: 3, kind: input, shape index: {}]
  %s4 = inlined_call_operand.vmem [shape: bf16[2,32,96], index: 4, kind: input, shape index: {}]
  %s5 = inlined_call_operand.vmem [shape: bf16[2,32,32], index: 5, kind: input, shape index: {}]
  %s6 = inlined_call_operand.vmem [shape: f32[2,1,32], index: 6, kind: input, shape index: {}]
  %s7 = inlined_call_operand.vmem [shape: f32[2,1,32], index: 7, kind: input, shape index: {}]
  %s8 = inlined_call_operand.vmem [shape: bf16[2,32,128], index: 8, kind: input, shape index: {}]
  %s9 = inlined_call_operand.vmem [shape: f32[2,1,128], index: 9, kind: input, shape index: {}]
  %s10 = inlined_call_operand.vmem [shape: bf16[2,128,32], index: 10, kind: input, shape index: {}]
  %s11 = inlined_call_operand.vmem [shape: f32[2,1,32], index: 11, kind: input, shape index: {}]
  %s12 = inlined_call_operand.hbm [shape: f32[16,32], index: 12, kind: output, shape index: {}]
  %s13 = sld [smem:[#allocation0]]
  $region93: #{tpu_custom_call.1} parent=0
    _
  %s15 = ssub.s32 1, %s13
  %s16 = scalar_select 0, %s15, %s13
  $region1: #{tpu_custom_call.1} parent=0
    #allocation2 [shape = 'u8[8192]{0}', space=vmem, size = 0x2000, scoped, tag = 'output window, operand 0']
    #allocation3 [shape = 's32[2]{0}', space=sflag, size = 0x8, scoped, tag = 'scoped memory for tpu_custom_call.1']
    %17 = vsyncpa [#allocation3], 0
    %s18 = scalar_lea.sflag [#allocation3], 1
    %19 = vsyncpa %s18, 0
    loop: start=0, step=1, limit=6
    $region2: #{tpu_custom_call.1} parent=1 // loop_pre_header
      _
    $region3: #{tpu_custom_call.1} parent=1 // loop_header
      %s21 = sphi 0, %s25
      %p22 = scmp.ge.s32.totalorder %s21, 6
      %s28 = sphi 0, %s40
      %s29 = sphi 0, %s36
      %s30 = sphi 0, %s28
      %s31 = sphi 0, %s29
      %s32 = sphi 0, %s30
      %s33 = sphi 0, %s31
      %s43 = sphi 0, %s45
      %s46 = sphi 0, %s43
      %s47 = sphi 0, %s46
      %s63 = sphi 0, %s47
      %s69 = sphi 0, %s71
      %s72 = sphi 0, %s69
      %s73 = sphi 0, %s72
      %s89 = sphi 0, %s73
      %s93 = sphi 0, %s93
      %s95 = sphi 0, %s93
      %s96 = sphi 0, %s95
      %s110 = sphi 0, %s96
      %s116 = sphi 0, %s118
      %s119 = sphi 0, %s116
      %s120 = sphi 0, %s119
      %s136 = sphi 0, %s120
      %s142 = sphi 0, %s144
      %s145 = sphi 0, %s142
      %s146 = sphi 0, %s145
      %s162 = sphi 0, %s146
      %s168 = sphi 0, %s170
      %s171 = sphi 0, %s168
      %s172 = sphi 0, %s171
      %s188 = sphi 0, %s172
      %s194 = sphi 0, %s196
      %s197 = sphi 0, %s194
      %s198 = sphi 0, %s197
      %s214 = sphi 0, %s198
      %s220 = sphi 0, %s222
      %s223 = sphi 0, %s220
      %s224 = sphi 0, %s223
      %s240 = sphi 0, %s224
      %s246 = sphi 0, %s248
      %s249 = sphi 0, %s246
      %s250 = sphi 0, %s249
      %s266 = sphi 0, %s250
      %s272 = sphi 0, %s274
      %s275 = sphi 0, %s272
      %s276 = sphi 0, %s275
      %s292 = sphi 0, %s276
      %s298 = sphi 0, %s300
      %s301 = sphi 0, %s298
      %s302 = sphi 0, %s301
      %s318 = sphi 0, %s302
      %s324 = sphi 0, %s326
      %s327 = sphi 0, %s324
      %s328 = sphi 0, %s327
      %s344 = sphi 0, %s328
      %s350 = sphi 0, %s352
      %s353 = sphi 0, %s350
      %s354 = sphi 0, %s353
      %s370 = sphi 0, %s354
    $region4: #{tpu_custom_call.1} parent=1 // loop_header_branch
      %24 = sbr.rel (%p22) target = $region8
    $region5: #{tpu_custom_call.1} parent=1 // loop_body
      %s26 = ssub.s32 %s21, 1
      %s27 = ssub.s32 %s21, 2
      %s34 = sadd.s32 1, %s29
      %p35 = scmp.ge.s32.totalorder %s34, 2
      %s36 = scalar_select %p35, 0, %s34
      %s37 = sadd.s32 1, %s28
      %s38 = scalar_select %p35, %s37, %s28
      %p39 = scmp.ge.s32.totalorder %s38, 2
      %s40 = scalar_select %p39, 0, %s38
      %s41 = ssub.s32 %s28, %s40
      %p42 = scmp.eq.s32.totalorder %s41, 0
      %s44 = sadd.s32 %s43, 1
      %s45 = scalar_select %p42, %s43, %s44
      %p48 = pneg %p42
      %p49 = scmp.eq.s32.totalorder %s21, 3
      %p50 = por %p48, %p49
      %p51 = scmp.ne.s32.totalorder %s43, %s46
      %p52 = scmp.eq.s32.totalorder %s21, 0
      %p53 = por %p51, %p52
      %p54 = scmp.ne.s32.totalorder %s43, %s46
      %p55 = scmp.eq.s32.totalorder %s26, 3
      %p56 = por %p54, %p55
      %p57 = scmp.ne.s32.totalorder %s46, %s47
      %p58 = scmp.eq.s32.totalorder %s26, 0
      %p59 = por %p57, %p58
      %p60 = scmp.ne.s32.totalorder %s46, %s47
      %p61 = scmp.eq.s32.totalorder %s27, 3
      %p62 = por %p60, %p61
      %p64 = scmp.ne.s32.totalorder %s47, %s63
      %p65 = scmp.eq.s32.totalorder %s27, 0
      %p66 = por %p64, %p65
      %s67 = ssub.s32 %s28, %s40
      %p68 = scmp.eq.s32.totalorder %s67, 0
      %s70 = sadd.s32 %s69, 1
      %s71 = scalar_select %p68, %s69, %s70
      %p74 = pneg %p68
      %p75 = scmp.eq.s32.totalorder %s21, 3
      %p76 = por %p74, %p75
      %p77 = scmp.ne.s32.totalorder %s69, %s72
      %p78 = scmp.eq.s32.totalorder %s21, 0
      %p79 = por %p77, %p78
      %p80 = scmp.ne.s32.totalorder %s69, %s72
      %p81 = scmp.eq.s32.totalorder %s26, 3
      %p82 = por %p80, %p81
      %p83 = scmp.ne.s32.totalorder %s72, %s73
      %p84 = scmp.eq.s32.totalorder %s26, 0
      %p85 = por %p83, %p84
      %p86 = scmp.ne.s32.totalorder %s72, %s73
      %p87 = scmp.eq.s32.totalorder %s27, 3
      %p88 = por %p86, %p87
      %p90 = scmp.ne.s32.totalorder %s73, %s89
      %p91 = scmp.eq.s32.totalorder %s27, 0
      %p92 = por %p90, %p91
      %s94 = sadd.s32 %s93, 1
      %p97 = scmp.eq.s32.totalorder %s21, 3
      %p98 = scmp.ne.s32.totalorder %s93, %s95
      %p99 = scmp.eq.s32.totalorder %s21, 0
      %p100 = por %p98, %p99
      %p101 = scmp.ne.s32.totalorder %s93, %s95
      %p102 = scmp.eq.s32.totalorder %s26, 3
      %p103 = por %p101, %p102
      %p104 = scmp.ne.s32.totalorder %s95, %s96
      %p105 = scmp.eq.s32.totalorder %s26, 0
      %p106 = por %p104, %p105
      %p107 = scmp.ne.s32.totalorder %s95, %s96
      %p108 = scmp.eq.s32.totalorder %s27, 3
      %p109 = por %p107, %p108
      %p111 = scmp.ne.s32.totalorder %s96, %s110
      %p112 = scmp.eq.s32.totalorder %s27, 0
      %p113 = por %p111, %p112
      %s114 = ssub.s32 %s29, %s36
      %p115 = scmp.eq.s32.totalorder %s114, 0
      %s117 = sadd.s32 %s116, 1
      %s118 = scalar_select %p115, %s116, %s117
      %p121 = pneg %p115
      %p122 = scmp.eq.s32.totalorder %s21, 3
      %p123 = por %p121, %p122
      %p124 = scmp.ne.s32.totalorder %s116, %s119
      %p125 = scmp.eq.s32.totalorder %s21, 0
      %p126 = por %p124, %p125
      %p127 = scmp.ne.s32.totalorder %s116, %s119
      %p128 = scmp.eq.s32.totalorder %s26, 3
      %p129 = por %p127, %p128
      %p130 = scmp.ne.s32.totalorder %s119, %s120
      %p131 = scmp.eq.s32.totalorder %s26, 0
      %p132 = por %p130, %p131
      %p133 = scmp.ne.s32.totalorder %s119, %s120
      %p134 = scmp.eq.s32.totalorder %s27, 3
      %p135 = por %p133, %p134
      %p137 = scmp.ne.s32.totalorder %s120, %s136
      %p138 = scmp.eq.s32.totalorder %s27, 0
      %p139 = por %p137, %p138
      %s140 = ssub.s32 %s29, %s36
      %p141 = scmp.eq.s32.totalorder %s140, 0
      %s143 = sadd.s32 %s142, 1
      %s144 = scalar_select %p141, %s142, %s143
      %p147 = pneg %p141
      %p148 = scmp.eq.s32.totalorder %s21, 3
      %p149 = por %p147, %p148
      %p150 = scmp.ne.s32.totalorder %s142, %s145
      %p151 = scmp.eq.s32.totalorder %s21, 0
      %p152 = por %p150, %p151
      %p153 = scmp.ne.s32.totalorder %s142, %s145
      %p154 = scmp.eq.s32.totalorder %s26, 3
      %p155 = por %p153, %p154
      %p156 = scmp.ne.s32.totalorder %s145, %s146
      %p157 = scmp.eq.s32.totalorder %s26, 0
      %p158 = por %p156, %p157
      %p159 = scmp.ne.s32.totalorder %s145, %s146
      %p160 = scmp.eq.s32.totalorder %s27, 3
      %p161 = por %p159, %p160
      %p163 = scmp.ne.s32.totalorder %s146, %s162
      %p164 = scmp.eq.s32.totalorder %s27, 0
      %p165 = por %p163, %p164
      %s166 = ssub.s32 %s29, %s36
      %p167 = scmp.eq.s32.totalorder %s166, 0
      %s169 = sadd.s32 %s168, 1
      %s170 = scalar_select %p167, %s168, %s169
      %p173 = pneg %p167
      %p174 = scmp.eq.s32.totalorder %s21, 3
      %p175 = por %p173, %p174
      %p176 = scmp.ne.s32.totalorder %s168, %s171
      %p177 = scmp.eq.s32.totalorder %s21, 0
      %p178 = por %p176, %p177
      %p179 = scmp.ne.s32.totalorder %s168, %s171
      %p180 = scmp.eq.s32.totalorder %s26, 3
      %p181 = por %p179, %p180
      %p182 = scmp.ne.s32.totalorder %s171, %s172
      %p183 = scmp.eq.s32.totalorder %s26, 0
      %p184 = por %p182, %p183
      %p185 = scmp.ne.s32.totalorder %s171, %s172
      %p186 = scmp.eq.s32.totalorder %s27, 3
      %p187 = por %p185, %p186
      %p189 = scmp.ne.s32.totalorder %s172, %s188
      %p190 = scmp.eq.s32.totalorder %s27, 0
      %p191 = por %p189, %p190
      %s192 = ssub.s32 %s29, %s36
      %p193 = scmp.eq.s32.totalorder %s192, 0
      %s195 = sadd.s32 %s194, 1
      %s196 = scalar_select %p193, %s194, %s195
      %p199 = pneg %p193
      %p200 = scmp.eq.s32.totalorder %s21, 3
      %p201 = por %p199, %p200
      %p202 = scmp.ne.s32.totalorder %s194, %s197
      %p203 = scmp.eq.s32.totalorder %s21, 0
      %p204 = por %p202, %p203
      %p205 = scmp.ne.s32.totalorder %s194, %s197
      %p206 = scmp.eq.s32.totalorder %s26, 3
      %p207 = por %p205, %p206
      %p208 = scmp.ne.s32.totalorder %s197, %s198
      %p209 = scmp.eq.s32.totalorder %s26, 0
      %p210 = por %p208, %p209
      %p211 = scmp.ne.s32.totalorder %s197, %s198
      %p212 = scmp.eq.s32.totalorder %s27, 3
      %p213 = por %p211, %p212
      %p215 = scmp.ne.s32.totalorder %s198, %s214
      %p216 = scmp.eq.s32.totalorder %s27, 0
      %p217 = por %p215, %p216
      %s218 = ssub.s32 %s29, %s36
      %p219 = scmp.eq.s32.totalorder %s218, 0
      %s221 = sadd.s32 %s220, 1
      %s222 = scalar_select %p219, %s220, %s221
      %p225 = pneg %p219
      %p226 = scmp.eq.s32.totalorder %s21, 3
      %p227 = por %p225, %p226
      %p228 = scmp.ne.s32.totalorder %s220, %s223
      %p229 = scmp.eq.s32.totalorder %s21, 0
      %p230 = por %p228, %p229
      %p231 = scmp.ne.s32.totalorder %s220, %s223
      %p232 = scmp.eq.s32.totalorder %s26, 3
      %p233 = por %p231, %p232
      %p234 = scmp.ne.s32.totalorder %s223, %s224
      %p235 = scmp.eq.s32.totalorder %s26, 0
      %p236 = por %p234, %p235
      %p237 = scmp.ne.s32.totalorder %s223, %s224
      %p238 = scmp.eq.s32.totalorder %s27, 3
      %p239 = por %p237, %p238
      %p241 = scmp.ne.s32.totalorder %s224, %s240
      %p242 = scmp.eq.s32.totalorder %s27, 0
      %p243 = por %p241, %p242
      %s244 = ssub.s32 %s29, %s36
      %p245 = scmp.eq.s32.totalorder %s244, 0
      %s247 = sadd.s32 %s246, 1
      %s248 = scalar_select %p245, %s246, %s247
      %p251 = pneg %p245
      %p252 = scmp.eq.s32.totalorder %s21, 3
      %p253 = por %p251, %p252
      %p254 = scmp.ne.s32.totalorder %s246, %s249
      %p255 = scmp.eq.s32.totalorder %s21, 0
      %p256 = por %p254, %p255
      %p257 = scmp.ne.s32.totalorder %s246, %s249
      %p258 = scmp.eq.s32.totalorder %s26, 3
      %p259 = por %p257, %p258
      %p260 = scmp.ne.s32.totalorder %s249, %s250
      %p261 = scmp.eq.s32.totalorder %s26, 0
      %p262 = por %p260, %p261
      %p263 = scmp.ne.s32.totalorder %s249, %s250
      %p264 = scmp.eq.s32.totalorder %s27, 3
      %p265 = por %p263, %p264
      %p267 = scmp.ne.s32.totalorder %s250, %s266
      %p268 = scmp.eq.s32.totalorder %s27, 0
      %p269 = por %p267, %p268
      %s270 = ssub.s32 %s29, %s36
      %p271 = scmp.eq.s32.totalorder %s270, 0
      %s273 = sadd.s32 %s272, 1
      %s274 = scalar_select %p271, %s272, %s273
      %p277 = pneg %p271
      %p278 = scmp.eq.s32.totalorder %s21, 3
      %p279 = por %p277, %p278
      %p280 = scmp.ne.s32.totalorder %s272, %s275
      %p281 = scmp.eq.s32.totalorder %s21, 0
      %p282 = por %p280, %p281
      %p283 = scmp.ne.s32.totalorder %s272, %s275
      %p284 = scmp.eq.s32.totalorder %s26, 3
      %p285 = por %p283, %p284
      %p286 = scmp.ne.s32.totalorder %s275, %s276
      %p287 = scmp.eq.s32.totalorder %s26, 0
      %p288 = por %p286, %p287
      %p289 = scmp.ne.s32.totalorder %s275, %s276
      %p290 = scmp.eq.s32.totalorder %s27, 3
      %p291 = por %p289, %p290
      %p293 = scmp.ne.s32.totalorder %s276, %s292
      %p294 = scmp.eq.s32.totalorder %s27, 0
      %p295 = por %p293, %p294
      %s296 = ssub.s32 %s29, %s36
      %p297 = scmp.eq.s32.totalorder %s296, 0
      %s299 = sadd.s32 %s298, 1
      %s300 = scalar_select %p297, %s298, %s299
      %p303 = pneg %p297
      %p304 = scmp.eq.s32.totalorder %s21, 3
      %p305 = por %p303, %p304
      %p306 = scmp.ne.s32.totalorder %s298, %s301
      %p307 = scmp.eq.s32.totalorder %s21, 0
      %p308 = por %p306, %p307
      %p309 = scmp.ne.s32.totalorder %s298, %s301
      %p310 = scmp.eq.s32.totalorder %s26, 3
      %p311 = por %p309, %p310
      %p312 = scmp.ne.s32.totalorder %s301, %s302
      %p313 = scmp.eq.s32.totalorder %s26, 0
      %p314 = por %p312, %p313
      %p315 = scmp.ne.s32.totalorder %s301, %s302
      %p316 = scmp.eq.s32.totalorder %s27, 3
      %p317 = por %p315, %p316
      %p319 = scmp.ne.s32.totalorder %s302, %s318
      %p320 = scmp.eq.s32.totalorder %s27, 0
      %p321 = por %p319, %p320
      %s322 = ssub.s32 %s29, %s36
      %p323 = scmp.eq.s32.totalorder %s322, 0
      %s325 = sadd.s32 %s324, 1
      %s326 = scalar_select %p323, %s324, %s325
      %p329 = pneg %p323
      %p330 = scmp.eq.s32.totalorder %s21, 3
      %p331 = por %p329, %p330
      %p332 = scmp.ne.s32.totalorder %s324, %s327
      %p333 = scmp.eq.s32.totalorder %s21, 0
      %p334 = por %p332, %p333
      %p335 = scmp.ne.s32.totalorder %s324, %s327
      %p336 = scmp.eq.s32.totalorder %s26, 3
      %p337 = por %p335, %p336
      %p338 = scmp.ne.s32.totalorder %s327, %s328
      %p339 = scmp.eq.s32.totalorder %s26, 0
      %p340 = por %p338, %p339
      %p341 = scmp.ne.s32.totalorder %s327, %s328
      %p342 = scmp.eq.s32.totalorder %s27, 3
      %p343 = por %p341, %p342
      %p345 = scmp.ne.s32.totalorder %s328, %s344
      %p346 = scmp.eq.s32.totalorder %s27, 0
      %p347 = por %p345, %p346
      %s348 = ssub.s32 %s28, %s40
      %p349 = scmp.eq.s32.totalorder %s348, 0
      %s351 = sadd.s32 %s350, 1
      %s352 = scalar_select %p349, %s350, %s351
      %p355 = pneg %p349
      %p356 = scmp.eq.s32.totalorder %s21, 3
      %p357 = por %p355, %p356
      %p358 = scmp.ne.s32.totalorder %s350, %s353
      %p359 = scmp.eq.s32.totalorder %s21, 0
      %p360 = por %p358, %p359
      %p361 = scmp.ne.s32.totalorder %s350, %s353
      %p362 = scmp.eq.s32.totalorder %s26, 3
      %p363 = por %p361, %p362
      %p364 = scmp.ne.s32.totalorder %s353, %s354
      %p365 = scmp.eq.s32.totalorder %s26, 0
      %p366 = por %p364, %p365
      %p367 = scmp.ne.s32.totalorder %s353, %s354
      %p368 = scmp.eq.s32.totalorder %s27, 3
      %p369 = por %p367, %p368
      %p371 = scmp.ne.s32.totalorder %s354, %s370
      %p372 = scmp.eq.s32.totalorder %s27, 0
      %p373 = por %p371, %p372
      %p374 = scmp.le.s32.totalorder 1, %s21
      %p375 = scmp.lt.s32.totalorder %s21, 5
      %p376 = pnand %p374, %p375
      %p377 = pneg %p376
      // Predicated region
      $region9: #{tpu_custom_call.1} parent=5 // pred_check
        _
      $region10: #{tpu_custom_call.1} parent=5 // pred_check_branch
        %379 = sbr.rel (%p376) target = $region12
      $region11: #{tpu_custom_call.1} parent=5 // pred_region
        %s380 = ssub.s32 %s21, 1
        // Predicated region
        $region13: #{tpu_custom_call.1} parent=11 // pred_check
          %p381 = pneg %p106
        $region14: #{tpu_custom_call.1} parent=11 // pred_check_branch
          %383 = sbr.rel (%p381) target = $region16
        $region15: #{tpu_custom_call.1} parent=11 // pred_region
          _
        $region16: #{tpu_custom_call.1} parent=11 // pred_fallthru
          _
      $region12: #{tpu_custom_call.1} parent=5 // pred_fallthru
        _
      %p384 = scmp.lt.s32.totalorder %s21, 4
      // Predicated region
      $region17: #{tpu_custom_call.1} parent=5 // pred_check
        %p385 = pneg %p384
      $region18: #{tpu_custom_call.1} parent=5 // pred_check_branch
        %387 = sbr.rel (%p385) target = $region20
      $region19: #{tpu_custom_call.1} parent=5 // pred_region
        // Predicated region
        $region21: #{tpu_custom_call.1} parent=19 // pred_check
          %p388 = pneg %p53
        $region22: #{tpu_custom_call.1} parent=19 // pred_check_branch
          %390 = sbr.rel (%p388) target = $region24
        $region23: #{tpu_custom_call.1} parent=19 // pred_region
          %p391 = scmp.lt.s32.totalorder %s28, 1
          %s392 = scalar_select %p391, %s28, 1
          %s393 = smul.addr %s392, 8
          %s394 = scalar_lea.vmem %s0, %s393
        $region24: #{tpu_custom_call.1} parent=19 // pred_fallthru
          _
        // Predicated region
        $region25: #{tpu_custom_call.1} parent=19 // pred_check
          %p395 = pneg %p79
        $region26: #{tpu_custom_call.1} parent=19 // pred_check_branch
          %397 = sbr.rel (%p395) target = $region28
        $region27: #{tpu_custom_call.1} parent=19 // pred_region
          %s398 = smul.u32 4, %s28
          %p399 = scmp.lt.s32.totalorder %s398, 7
          %s400 = scalar_select %p399, %s398, 7
          %s401 = scalar_lea.vmem %s1, %s400
          %s402 = smul.u32 4, %s28
        $region28: #{tpu_custom_call.1} parent=19 // pred_fallthru
          _
        // Predicated region
        $region29: #{tpu_custom_call.1} parent=19 // pred_check
          %p403 = pneg %p126
        $region30: #{tpu_custom_call.1} parent=19 // pred_check_branch
          %405 = sbr.rel (%p403) target = $region32
        $region31: #{tpu_custom_call.1} parent=19 // pred_region
          %p406 = scmp.lt.s32.totalorder %s29, 1
          %s407 = scalar_select %p406, %s29, 1
          %s408 = scalar_lea.vmem %s3, %s407
        $region32: #{tpu_custom_call.1} parent=19 // pred_fallthru
          _
        // Predicated region
        $region33: #{tpu_custom_call.1} parent=19 // pred_check
          %p409 = pneg %p152
        $region34: #{tpu_custom_call.1} parent=19 // pred_check_branch
          %411 = sbr.rel (%p409) target = $region36
        $region35: #{tpu_custom_call.1} parent=19 // pred_region
          %p412 = scmp.lt.s32.totalorder %s29, 1
          %s413 = scalar_select %p412, %s29, 1
          %s414 = smul.addr %s413, 4
          %s415 = smul.addr %s414, 4
          %s416 = scalar_lea.vmem %s4, %s415
        $region36: #{tpu_custom_call.1} parent=19 // pred_fallthru
          _
        // Predicated region
        $region37: #{tpu_custom_call.1} parent=19 // pred_check
          %p417 = pneg %p178
        $region38: #{tpu_custom_call.1} parent=19 // pred_check_branch
          %419 = sbr.rel (%p417) target = $region40
        $region39: #{tpu_custom_call.1} parent=19 // pred_region
          %p420 = scmp.lt.s32.totalorder %s29, 1
          %s421 = scalar_select %p420, %s29, 1
          %s422 = smul.addr %s421, 4
          %s423 = smul.addr %s422, 4
          %s424 = scalar_lea.vmem %s5, %s423
        $region40: #{tpu_custom_call.1} parent=19 // pred_fallthru
          _
        // Predicated region
        $region41: #{tpu_custom_call.1} parent=19 // pred_check
          %p425 = pneg %p204
        $region42: #{tpu_custom_call.1} parent=19 // pred_check_branch
          %427 = sbr.rel (%p425) target = $region44
        $region43: #{tpu_custom_call.1} parent=19 // pred_region
          %p428 = scmp.lt.s32.totalorder %s29, 1
          %s429 = scalar_select %p428, %s29, 1
          %s430 = scalar_lea.vmem %s6, %s429
        $region44: #{tpu_custom_call.1} parent=19 // pred_fallthru
          _
        // Predicated region
        $region45: #{tpu_custom_call.1} parent=19 // pred_check
          %p431 = pneg %p230
        $region46: #{tpu_custom_call.1} parent=19 // pred_check_branch
          %433 = sbr.rel (%p431) target = $region48
        $region47: #{tpu_custom_call.1} parent=19 // pred_region
          %p434 = scmp.lt.s32.totalorder %s29, 1
          %s435 = scalar_select %p434, %s29, 1
          %s436 = scalar_lea.vmem %s7, %s435
        $region48: #{tpu_custom_call.1} parent=19 // pred_fallthru
          _
        // Predicated region
        $region49: #{tpu_custom_call.1} parent=19 // pred_check
          %p437 = pneg %p256
        $region50: #{tpu_custom_call.1} parent=19 // pred_check_branch
          %439 = sbr.rel (%p437) target = $region52
        $region51: #{tpu_custom_call.1} parent=19 // pred_region
          %p440 = scmp.lt.s32.totalorder %s29, 1
          %s441 = scalar_select %p440, %s29, 1
          %s442 = smul.addr %s441, 4
          %s443 = smul.addr %s442, 4
          %s444 = scalar_lea.vmem %s8, %s443
        $region52: #{tpu_custom_call.1} parent=19 // pred_fallthru
          _
        // Predicated region
        $region53: #{tpu_custom_call.1} parent=19 // pred_check
          %p445 = pneg %p282
        $region54: #{tpu_custom_call.1} parent=19 // pred_check_branch
          %447 = sbr.rel (%p445) target = $region56
        $region55: #{tpu_custom_call.1} parent=19 // pred_region
          %p448 = scmp.lt.s32.totalorder %s29, 1
          %s449 = scalar_select %p448, %s29, 1
          %s450 = scalar_lea.vmem %s9, %s449
        $region56: #{tpu_custom_call.1} parent=19 // pred_fallthru
          _
        // Predicated region
        $region57: #{tpu_custom_call.1} parent=19 // pred_check
          %p451 = pneg %p308
        $region58: #{tpu_custom_call.1} parent=19 // pred_check_branch
          %453 = sbr.rel (%p451) target = $region60
        $region59: #{tpu_custom_call.1} parent=19 // pred_region
          %p454 = scmp.lt.s32.totalorder %s29, 1
          %s455 = scalar_select %p454, %s29, 1
          %s456 = smul.addr %s455, 16
          %s457 = smul.addr %s456, 4
          %s458 = scalar_lea.vmem %s10, %s457
        $region60: #{tpu_custom_call.1} parent=19 // pred_fallthru
          _
        // Predicated region
        $region61: #{tpu_custom_call.1} parent=19 // pred_check
          %p459 = pneg %p334
        $region62: #{tpu_custom_call.1} parent=19 // pred_check_branch
          %461 = sbr.rel (%p459) target = $region64
        $region63: #{tpu_custom_call.1} parent=19 // pred_region
          %p462 = scmp.lt.s32.totalorder %s29, 1
          %s463 = scalar_select %p462, %s29, 1
          %s464 = scalar_lea.vmem %s11, %s463
        $region64: #{tpu_custom_call.1} parent=19 // pred_fallthru
          _
      $region20: #{tpu_custom_call.1} parent=5 // pred_fallthru
        _
      %p465 = scmp.le.s32.totalorder 1, %s21
      %p466 = scmp.lt.s32.totalorder %s21, 5
      %p467 = pnand %p465, %p466
      %p468 = pneg %p467
      // Predicated region
      $region65: #{tpu_custom_call.1} parent=5 // pred_check
        _
      $region66: #{tpu_custom_call.1} parent=5 // pred_check_branch
        %470 = sbr.rel (%p467) target = $region68
      $region67: #{tpu_custom_call.1} parent=5 // pred_region
        %s471 = ssub.s32 %s21, 1
        %p472 = scmp.lt.s32.totalorder %s30, 1
        %s473 = scalar_select %p472, %s30, 1
        %s474 = smul.addr %s473, 8
        %s475 = scalar_lea.vmem %s0, %s474
        %p476 = pneg %p59
        %p477 = pneg %p56
        %s478 = smul.u32 4, %s30
        %p479 = scmp.lt.s32.totalorder %s478, 7
        %s480 = scalar_select %p479, %s478, 7
        %s481 = scalar_lea.vmem %s1, %s480
        %p482 = pneg %p85
        %p483 = pneg %p82
        %p484 = pneg %p106
        %p485 = pneg %p103
        %p486 = scmp.lt.s32.totalorder %s31, 1
        %s487 = scalar_select %p486, %s31, 1
        %s488 = scalar_lea.vmem %s3, %s487
        %p489 = pneg %p132
        %p490 = pneg %p129
        %p491 = scmp.lt.s32.totalorder %s31, 1
        %s492 = scalar_select %p491, %s31, 1
        %s493 = smul.addr %s492, 4
        %s494 = smul.addr %s493, 4
        %s495 = scalar_lea.vmem %s4, %s494
        %p496 = pneg %p158
        %p497 = pneg %p155
        %p498 = scmp.lt.s32.totalorder %s31, 1
        %s499 = scalar_select %p498, %s31, 1
        %s500 = smul.addr %s499, 4
        %s501 = smul.addr %s500, 4
        %s502 = scalar_lea.vmem %s5, %s501
        %p503 = pneg %p184
        %p504 = pneg %p181
        %p505 = scmp.lt.s32.totalorder %s31, 1
        %s506 = scalar_select %p505, %s31, 1
        %s507 = scalar_lea.vmem %s6, %s506
        %p508 = pneg %p210
        %p509 = pneg %p207
        %p510 = scmp.lt.s32.totalorder %s31, 1
        %s511 = scalar_select %p510, %s31, 1
        %s512 = scalar_lea.vmem %s7, %s511
        %p513 = pneg %p236
        %p514 = pneg %p233
        %p515 = scmp.lt.s32.totalorder %s31, 1
        %s516 = scalar_select %p515, %s31, 1
        %s517 = smul.addr %s516, 4
        %s518 = smul.addr %s517, 4
        %s519 = scalar_lea.vmem %s8, %s518
        %p520 = pneg %p262
        %p521 = pneg %p259
        %p522 = scmp.lt.s32.totalorder %s31, 1
        %s523 = scalar_select %p522, %s31, 1
        %s524 = scalar_lea.vmem %s9, %s523
        %p525 = pneg %p288
        %p526 = pneg %p285
        %p527 = scmp.lt.s32.totalorder %s31, 1
        %s528 = scalar_select %p527, %s31, 1
        %s529 = smul.addr %s528, 16
        %s530 = smul.addr %s529, 4
        %s531 = scalar_lea.vmem %s10, %s530
        %p532 = pneg %p314
        %p533 = pneg %p311
        %p534 = scmp.lt.s32.totalorder %s31, 1
        %s535 = scalar_select %p534, %s31, 1
        %s536 = scalar_lea.vmem %s11, %s535
        %p537 = pneg %p340
        %p538 = pneg %p337
        %p539 = pneg %p366
        %p540 = pneg %p363
        %s541 = sand.u32 %s353, 1
        %s542 = scalar_lea.sflag [#allocation3], %s541
        %s543 = sand.u32 %s353, 1
        %s544 = smul.addr %s543, 8
        %s545 = scalar_lea.vmem [#allocation2], %s544
        %p546 = scmp.lt.s32.totalorder %s30, 1
        %s547 = scalar_select %p546, %s30, 1
        %s548 = smul.addr %s547, 8
        %s549 = scalar_lea.vmem %s0, %s548
        %s550 = smul.u32 4, %s30
        %p551 = scmp.lt.s32.totalorder %s550, 7
        %s552 = scalar_select %p551, %s550, 7
        %s553 = scalar_lea.vmem %s1, %s552
        %s554 = smul.u32 4, %s30
        %p555 = scmp.lt.s32.totalorder %s31, 1
        %s556 = scalar_select %p555, %s31, 1
        %s557 = scalar_lea.vmem %s3, %s556
        %p558 = scmp.lt.s32.totalorder %s31, 1
        %s559 = scalar_select %p558, %s31, 1
        %s560 = smul.addr %s559, 4
        %s561 = smul.addr %s560, 4
        %s562 = scalar_lea.vmem %s4, %s561
        %p563 = scmp.lt.s32.totalorder %s31, 1
        %s564 = scalar_select %p563, %s31, 1
        %s565 = smul.addr %s564, 4
        %s566 = smul.addr %s565, 4
        %s567 = scalar_lea.vmem %s5, %s566
        %p568 = scmp.lt.s32.totalorder %s31, 1
        %s569 = scalar_select %p568, %s31, 1
        %s570 = scalar_lea.vmem %s6, %s569
        %p571 = scmp.lt.s32.totalorder %s31, 1
        %s572 = scalar_select %p571, %s31, 1
        %s573 = scalar_lea.vmem %s7, %s572
        %p574 = scmp.lt.s32.totalorder %s31, 1
        %s575 = scalar_select %p574, %s31, 1
        %s576 = smul.addr %s575, 4
        %s577 = smul.addr %s576, 4
        %s578 = scalar_lea.vmem %s8, %s577
        %p579 = scmp.lt.s32.totalorder %s31, 1
        %s580 = scalar_select %p579, %s31, 1
        %s581 = scalar_lea.vmem %s9, %s580
        %p582 = scmp.lt.s32.totalorder %s31, 1
        %s583 = scalar_select %p582, %s31, 1
        %s584 = smul.addr %s583, 16
        %s585 = smul.addr %s584, 4
        %s586 = scalar_lea.vmem %s10, %s585
        %p587 = scmp.lt.s32.totalorder %s31, 1
        %s588 = scalar_select %p587, %s31, 1
        %s589 = scalar_lea.vmem %s11, %s588
        %p591 = scmp.eq.s32.totalorder %s31, 0
        // Predicated region
        $region69: #{tpu_custom_call.1} parent=67 // pred_check
          %p592 = pneg %p591
        $region70: #{tpu_custom_call.1} parent=67 // pred_check_branch
          %594 = sbr.rel (%p592) target = $region72
        $region71: #{tpu_custom_call.1} parent=67 // pred_region
          %v595 = vld [vmem:[%s549] sm:$0xff]
          %vm596 = vcmask 261120
          %597 = vst.msk [vmem:[%s545] sm:$0xff] %vm596, %v595
        $region72: #{tpu_custom_call.1} parent=67 // pred_fallthru
          _
        %v598 = vld [vmem:[%s545] sm:$0xff]
        %v599 = vld [vmem:[%s557] sm:$0x1]
        %v600 = vmul.f32 %v598, %v598
        %vm601 = vcmask 261120
        %v602 = vsel %vm601, %v600, 0.0
        %603 = vadd.xlane.f32.xlu0 %v602
        %v604 = vpop.xlane.xlu0 %603
        %v605 = vmul.f32 %v604, 0.03125
        %v606 = vrsqrt.pop %v605
        %v607 = vmul.f32 %v605, %v606
        %vm608 = vcmp.eq.f32.partialorder %v605, inf
        %v609 = vsel %vm608, %v605, %v607
        %vm610 = vcmp.eq.f32.partialorder %v605, 0.0
        %v611 = vand.u32 %v605, 2147483648
        %v612 = vsel %vm610, %v611, %v609
        %v614 = vlaneseq
        %v615 = vshrl.u32 %v614, 7
        %v616 = vsub.s32 0, %v615
        %v617 = vrot.slane %v599, %v616
        %v619 = vmul.f32 %v598, %v617
        %v620 = vadd.f32 %v612, 1e-08
        %v621 = vrcp.pop %v620
        %v622 = vmul.f32 %v619, %v621
        %v623 = vpack.c.bf16 %v622, %v622
        %v624 = vld [vmem:[%s562] sm:$0xf]
        %v625 = vld [vmem:[%s562 + $0x4] sm:$0xf]
        %v626 = vld [vmem:[%s562 + $0x8] sm:$0xf]
        %v627 = vld [vmem:[%s562 + $0xc] sm:$0xf]
        %v632 = vunpack.c.l.b16 %v624
        %v633 = vunpack.c.l.b16 %v625
        %v634 = vunpack.c.l.b16 %v626
        %v635 = vunpack.c.l.b16 %v627
        %v636 = vpack.c.b16 %v633, %v632
        %v637 = vpack.c.b16 %v635, %v634
        %v641 = vsel %vm601, %v623, 0
        %643 = vmatprep.subr.bf16.mxu0 0
        %644 = vmatpush1.bf16.msra.mxu0 %v636
        %645 = vmatprep.subr.bf16.mxu0 0
        %646 = vmatpush1.bf16.msra.mxu0 %v637
        %647 = vmatprep.subr.bf16.mxu0 0
        %648 = vmatpush1.bf16.msra.mxu0 0
        %649 = vmatprep.subr.bf16.mxu0 0
        %650 = vmatpush1.bf16.msra.mxu0 0
        %651 = vmatprep.subr.bf16.mxu0 0
        %652 = vmatpush1.bf16.msra.mxu0 0
        %653 = vmatprep.subr.bf16.mxu0 0
        %654 = vmatpush1.bf16.msra.mxu0 0
        %655 = vmatprep.subr.bf16.mxu0 0
        %656 = vmatpush1.bf16.msra.mxu0 0
        %657 = vmatprep.subr.bf16.mxu0 0
        %658 = vmatpush1.bf16.msra.mxu0 0
        %659 = vmatprep.subr.bf16.mxu0 0
        %660 = vmatpush1.bf16.msra.mxu0 0
        %661 = vmatprep.subr.bf16.mxu0 0
        %662 = vmatpush1.bf16.msra.mxu0 0
        %663 = vmatprep.subr.bf16.mxu0 0
        %664 = vmatpush1.bf16.msra.mxu0 0
        %665 = vmatprep.subr.bf16.mxu0 0
        %666 = vmatpush1.bf16.msra.mxu0 0
        %667 = vmatprep.subr.bf16.mxu0 0
        %668 = vmatpush1.bf16.msra.mxu0 0
        %669 = vmatprep.subr.bf16.mxu0 0
        %670 = vmatpush1.bf16.msra.mxu0 0
        %671 = vmatprep.subr.bf16.mxu0 0
        %672 = vmatpush1.bf16.msra.mxu0 0
        %673 = vmatprep.subr.bf16.mxu0 0
        %674 = vmatpush1.bf16.msra.mxu0 0
        %675 = vmatprep.mubr.bf16.mxu0 0
        %676 = vmatmul.mubr.bf16.gmra.mrb[0].mxu0 %v641
        %v677 = vpop.f32.mrb[0].mxu0
        %v678 = vadd.f32 0.0, %v677
        %v679 = vpop.f32.mrb[0].mxu0
        %v680 = vpop.f32.mrb[0].mxu0
        %v681 = vpop.f32.mrb[0].mxu0
        %682 = vdwg.mxu0
        %684 = vrot.lane.b32.xlu0 %v678, 104
        %v685 = vpop.permute.xlu0 %684
        %687 = vrot.lane.b32.xlu0 %v678, 80
        %v688 = vpop.permute.xlu0 %687
        %690 = vrot.lane.b32.xlu0 %v678, 56
        %v691 = vpop.permute.xlu0 %690
        %v693 = vpack.c.bf16 %v678, %v678
        %v694 = vpack.c.bf16 %v685, %v685
        %v695 = vpack.c.bf16 %v688, %v688
        %v696 = vpack.c.bf16 %v691, %v691
        %v697 = vld [vmem:[%s553] sm:$0x1]
        %v698 = vld [vmem:[%s553 + $0x1] sm:$0x1]
        %v699 = vld [vmem:[%s553 + $0x2] sm:$0x1]
        %v700 = vld [vmem:[%s553 + $0x3] sm:$0x1]
        %v705 = vlaneseq
        %v706 = vshrl.u32 %v705, 7
        %v707 = vsub.s32 0, %v706
        %v708 = vrot.slane %v697, %v707
        %v709 = vlaneseq
        %v710 = vshrl.u32 %v709, 7
        %v711 = vsub.s32 0, %v710
        %v712 = vrot.slane %v698, %v711
        %v713 = vlaneseq
        %v714 = vshrl.u32 %v713, 7
        %v715 = vsub.s32 0, %v714
        %v716 = vrot.slane %v699, %v715
        %v717 = vlaneseq
        %v718 = vshrl.u32 %v717, 7
        %v719 = vsub.s32 0, %v718
        %v720 = vrot.slane %v700, %v719
        %726 = vrot.lane.b32.xlu0 %v693, 120
        %v727 = vpop.permute.xlu0 %726
        %vm728 = vcmask 64512
        %v730 = vsel %vm728, %v693, 0
        %v733 = vsel %vm728, %v727, 0
        %735 = vmatprep.subr.bf16.mxu0 0
        %736 = vmatpush1.bf16.xpose.msra.mxu0 %v733
        %737 = vmatprep.subr.bf16.mxu0 0
        %738 = vmatpush1.bf16.xpose.msra.mxu0 0
        %739 = vmatprep.subr.bf16.mxu0 0
        %740 = vmatpush1.bf16.xpose.msra.mxu0 0
        %741 = vmatprep.subr.bf16.mxu0 0
        %742 = vmatpush1.bf16.xpose.msra.mxu0 0
        %743 = vmatprep.subr.bf16.mxu0 0
        %744 = vmatpush1.bf16.xpose.msra.mxu0 0
        %745 = vmatprep.subr.bf16.mxu0 0
        %746 = vmatpush1.bf16.xpose.msra.mxu0 0
        %747 = vmatprep.subr.bf16.mxu0 0
        %748 = vmatpush1.bf16.xpose.msra.mxu0 0
        %749 = vmatprep.subr.bf16.mxu0 0
        %750 = vmatpush1.bf16.xpose.msra.mxu0 0
        %751 = vmatprep.subr.bf16.mxu0 0
        %752 = vmatpush1.bf16.xpose.msra.mxu0 0
        %753 = vmatprep.subr.bf16.mxu0 0
        %754 = vmatpush1.bf16.xpose.msra.mxu0 0
        %755 = vmatprep.subr.bf16.mxu0 0
        %756 = vmatpush1.bf16.xpose.msra.mxu0 0
        %757 = vmatprep.subr.bf16.mxu0 0
        %758 = vmatpush1.bf16.xpose.msra.mxu0 0
        %759 = vmatprep.subr.bf16.mxu0 0
        %760 = vmatpush1.bf16.xpose.msra.mxu0 0
        %761 = vmatprep.subr.bf16.mxu0 0
        %762 = vmatpush1.bf16.xpose.msra.mxu0 0
        %763 = vmatprep.subr.bf16.mxu0 0
        %764 = vmatpush1.bf16.xpose.msra.mxu0 0
        %765 = vmatprep.subr.bf16.mxu0 0
        %766 = vmatpush1.bf16.xpose.msra.mxu0 0
        %767 = vmatprep.mubr.bf16.mxu0 0
        %768 = vmatmul.mubr.bf16.gmra.mrb[0].mxu0 %v730
        %v769 = vpop.f32.mrb[0].mxu0
        %v770 = vadd.f32 %v708, %v769
        %v771 = vpop.f32.mrb[0].mxu0
        %v772 = vpop.f32.mrb[0].mxu0
        %v773 = vpop.f32.mrb[0].mxu0
        %774 = vdwg.mxu0
        %776 = vrot.lane.b32.xlu0 %v694, 120
        %v777 = vpop.permute.xlu0 %776
        %v779 = vsel %vm728, %v694, 0
        %v782 = vsel %vm728, %v777, 0
        %784 = vmatprep.subr.bf16.mxu0 0
        %785 = vmatpush1.bf16.xpose.msra.mxu0 %v782
        %786 = vmatprep.subr.bf16.mxu0 0
        %787 = vmatpush1.bf16.xpose.msra.mxu0 0
        %788 = vmatprep.subr.bf16.mxu0 0
        %789 = vmatpush1.bf16.xpose.msra.mxu0 0
        %790 = vmatprep.subr.bf16.mxu0 0
        %791 = vmatpush1.bf16.xpose.msra.mxu0 0
        %792 = vmatprep.subr.bf16.mxu0 0
        %793 = vmatpush1.bf16.xpose.msra.mxu0 0
        %794 = vmatprep.subr.bf16.mxu0 0
        %795 = vmatpush1.bf16.xpose.msra.mxu0 0
        %796 = vmatprep.subr.bf16.mxu0 0
        %797 = vmatpush1.bf16.xpose.msra.mxu0 0
        %798 = vmatprep.subr.bf16.mxu0 0
        %799 = vmatpush1.bf16.xpose.msra.mxu0 0
        %800 = vmatprep.subr.bf16.mxu0 0
        %801 = vmatpush1.bf16.xpose.msra.mxu0 0
        %802 = vmatprep.subr.bf16.mxu0 0
        %803 = vmatpush1.bf16.xpose.msra.mxu0 0
        %804 = vmatprep.subr.bf16.mxu0 0
        %805 = vmatpush1.bf16.xpose.msra.mxu0 0
        %806 = vmatprep.subr.bf16.mxu0 0
        %807 = vmatpush1.bf16.xpose.msra.mxu0 0
        %808 = vmatprep.subr.bf16.mxu0 0
        %809 = vmatpush1.bf16.xpose.msra.mxu0 0
        %810 = vmatprep.subr.bf16.mxu0 0
        %811 = vmatpush1.bf16.xpose.msra.mxu0 0
        %812 = vmatprep.subr.bf16.mxu0 0
        %813 = vmatpush1.bf16.xpose.msra.mxu0 0
        %814 = vmatprep.subr.bf16.mxu0 0
        %815 = vmatpush1.bf16.xpose.msra.mxu0 0
        %816 = vmatprep.mubr.bf16.mxu0 0
        %817 = vmatmul.mubr.bf16.gmra.mrb[0].mxu0 %v779
        %v818 = vpop.f32.mrb[0].mxu0
        %v819 = vadd.f32 %v712, %v818
        %v820 = vpop.f32.mrb[0].mxu0
        %v821 = vpop.f32.mrb[0].mxu0
        %v822 = vpop.f32.mrb[0].mxu0
        %823 = vdwg.mxu0
        %825 = vrot.lane.b32.xlu0 %v695, 120
        %v826 = vpop.permute.xlu0 %825
        %v828 = vsel %vm728, %v695, 0
        %v831 = vsel %vm728, %v826, 0
        %833 = vmatprep.subr.bf16.mxu0 0
        %834 = vmatpush1.bf16.xpose.msra.mxu0 %v831
        %835 = vmatprep.subr.bf16.mxu0 0
        %836 = vmatpush1.bf16.xpose.msra.mxu0 0
        %837 = vmatprep.subr.bf16.mxu0 0
        %838 = vmatpush1.bf16.xpose.msra.mxu0 0
        %839 = vmatprep.subr.bf16.mxu0 0
        %840 = vmatpush1.bf16.xpose.msra.mxu0 0
        %841 = vmatprep.subr.bf16.mxu0 0
        %842 = vmatpush1.bf16.xpose.msra.mxu0 0
        %843 = vmatprep.subr.bf16.mxu0 0
        %844 = vmatpush1.bf16.xpose.msra.mxu0 0
        %845 = vmatprep.subr.bf16.mxu0 0
        %846 = vmatpush1.bf16.xpose.msra.mxu0 0
        %847 = vmatprep.subr.bf16.mxu0 0
        %848 = vmatpush1.bf16.xpose.msra.mxu0 0
        %849 = vmatprep.subr.bf16.mxu0 0
        %850 = vmatpush1.bf16.xpose.msra.mxu0 0
        %851 = vmatprep.subr.bf16.mxu0 0
        %852 = vmatpush1.bf16.xpose.msra.mxu0 0
        %853 = vmatprep.subr.bf16.mxu0 0
        %854 = vmatpush1.bf16.xpose.msra.mxu0 0
        %855 = vmatprep.subr.bf16.mxu0 0
        %856 = vmatpush1.bf16.xpose.msra.mxu0 0
        %857 = vmatprep.subr.bf16.mxu0 0
        %858 = vmatpush1.bf16.xpose.msra.mxu0 0
        %859 = vmatprep.subr.bf16.mxu0 0
        %860 = vmatpush1.bf16.xpose.msra.mxu0 0
        %861 = vmatprep.subr.bf16.mxu0 0
        %862 = vmatpush1.bf16.xpose.msra.mxu0 0
        %863 = vmatprep.subr.bf16.mxu0 0
        %864 = vmatpush1.bf16.xpose.msra.mxu0 0
        %865 = vmatprep.mubr.bf16.mxu0 0
        %866 = vmatmul.mubr.bf16.gmra.mrb[0].mxu0 %v828
        %v867 = vpop.f32.mrb[0].mxu0
        %v868 = vadd.f32 %v716, %v867
        %v869 = vpop.f32.mrb[0].mxu0
        %v870 = vpop.f32.mrb[0].mxu0
        %v871 = vpop.f32.mrb[0].mxu0
        %872 = vdwg.mxu0
        %874 = vrot.lane.b32.xlu0 %v696, 120
        %v875 = vpop.permute.xlu0 %874
        %v877 = vsel %vm728, %v696, 0
        %v880 = vsel %vm728, %v875, 0
        %882 = vmatprep.subr.bf16.mxu0 0
        %883 = vmatpush1.bf16.xpose.msra.mxu0 %v880
        %884 = vmatprep.subr.bf16.mxu0 0
        %885 = vmatpush1.bf16.xpose.msra.mxu0 0
        %886 = vmatprep.subr.bf16.mxu0 0
        %887 = vmatpush1.bf16.xpose.msra.mxu0 0
        %888 = vmatprep.subr.bf16.mxu0 0
        %889 = vmatpush1.bf16.xpose.msra.mxu0 0
        %890 = vmatprep.subr.bf16.mxu0 0
        %891 = vmatpush1.bf16.xpose.msra.mxu0 0
        %892 = vmatprep.subr.bf16.mxu0 0
        %893 = vmatpush1.bf16.xpose.msra.mxu0 0
        %894 = vmatprep.subr.bf16.mxu0 0
        %895 = vmatpush1.bf16.xpose.msra.mxu0 0
        %896 = vmatprep.subr.bf16.mxu0 0
        %897 = vmatpush1.bf16.xpose.msra.mxu0 0
        %898 = vmatprep.subr.bf16.mxu0 0
        %899 = vmatpush1.bf16.xpose.msra.mxu0 0
        %900 = vmatprep.subr.bf16.mxu0 0
        %901 = vmatpush1.bf16.xpose.msra.mxu0 0
        %902 = vmatprep.subr.bf16.mxu0 0
        %903 = vmatpush1.bf16.xpose.msra.mxu0 0
        %904 = vmatprep.subr.bf16.mxu0 0
        %905 = vmatpush1.bf16.xpose.msra.mxu0 0
        %906 = vmatprep.subr.bf16.mxu0 0
        %907 = vmatpush1.bf16.xpose.msra.mxu0 0
        %908 = vmatprep.subr.bf16.mxu0 0
        %909 = vmatpush1.bf16.xpose.msra.mxu0 0
        %910 = vmatprep.subr.bf16.mxu0 0
        %911 = vmatpush1.bf16.xpose.msra.mxu0 0
        %912 = vmatprep.subr.bf16.mxu0 0
        %913 = vmatpush1.bf16.xpose.msra.mxu0 0
        %914 = vmatprep.mubr.bf16.mxu0 0
        %915 = vmatmul.mubr.bf16.gmra.mrb[0].mxu0 %v877
        %v916 = vpop.f32.mrb[0].mxu0
        %v917 = vadd.f32 %v720, %v916
        %v918 = vpop.f32.mrb[0].mxu0
        %v919 = vpop.f32.mrb[0].mxu0
        %v920 = vpop.f32.mrb[0].mxu0
        %921 = vdwg.mxu0
        %v922 = vsel %vm728, %v770, -inf
        %923 = vmax.xlane.f32.xlu0 %v922
        %v924 = vpop.xlane.xlu0 %923
        %v925 = vsel %vm728, %v819, -inf
        %926 = vmax.xlane.f32.xlu0 %v925
        %v927 = vpop.xlane.xlu0 %926
        %v928 = vsel %vm728, %v868, -inf
        %929 = vmax.xlane.f32.xlu0 %v928
        %v930 = vpop.xlane.xlu0 %929
        %v931 = vsel %vm728, %v917, -inf
        %932 = vmax.xlane.f32.xlu0 %v931
        %v933 = vpop.xlane.xlu0 %932
        %v934 = vsub.f32 %v770, %v924
        %v935 = vsub.f32 %v819, %v927
        %v936 = vsub.f32 %v868, %v930
        %v937 = vsub.f32 %v917, %v933
        %v938 = vmul.f32 %v934, 1.442695
        %v939 = vpow.pop %v938
        %v940 = vmul.f32 %v935, 1.442695
        %v941 = vpow.pop %v940
        %v942 = vmul.f32 %v936, 1.442695
        %v943 = vpow.pop %v942
        %v944 = vmul.f32 %v937, 1.442695
        %v945 = vpow.pop %v944
        %v946 = vsel %vm728, %v939, 0.0
        %947 = vadd.xlane.f32.xlu0 %v946
        %v948 = vpop.xlane.xlu0 %947
        %v949 = vsel %vm728, %v941, 0.0
        %950 = vadd.xlane.f32.xlu0 %v949
        %v951 = vpop.xlane.xlu0 %950
        %v952 = vsel %vm728, %v943, 0.0
        %953 = vadd.xlane.f32.xlu0 %v952
        %v954 = vpop.xlane.xlu0 %953
        %v955 = vsel %vm728, %v945, 0.0
        %956 = vadd.xlane.f32.xlu0 %v955
        %v957 = vpop.xlane.xlu0 %956
        %v958 = vrcp.pop %v948
        %v959 = vmul.f32 %v939, %v958
        %v960 = vrcp.pop %v951
        %v961 = vmul.f32 %v941, %v960
        %v962 = vrcp.pop %v954
        %v963 = vmul.f32 %v943, %v962
        %v964 = vrcp.pop %v957
        %v965 = vmul.f32 %v945, %v964
        %v966 = vpack.c.bf16 %v959, %v959
        %v967 = vpack.c.bf16 %v961, %v961
        %v968 = vpack.c.bf16 %v963, %v963
        %v969 = vpack.c.bf16 %v965, %v965
        %970 = vrot.lane.b32.xlu0 %v693, 112
        %v971 = vpop.permute.xlu0 %970
        %v973 = vsel %vm728, %v966, 0
        %vm975 = vcmask 1043456
        %v977 = vsel %vm975, %v971, 0
        %979 = vmatprep.subr.bf16.mxu0 0
        %980 = vmatpush1.bf16.msra.mxu0 %v977
        %981 = vmatprep.subr.bf16.mxu0 0
        %982 = vmatpush1.bf16.msra.mxu0 0
        %983 = vmatprep.subr.bf16.mxu0 0
        %984 = vmatpush1.bf16.msra.mxu0 0
        %985 = vmatprep.subr.bf16.mxu0 0
        %986 = vmatpush1.bf16.msra.mxu0 0
        %987 = vmatprep.subr.bf16.mxu0 0
        %988 = vmatpush1.bf16.msra.mxu0 0
        %989 = vmatprep.subr.bf16.mxu0 0
        %990 = vmatpush1.bf16.msra.mxu0 0
        %991 = vmatprep.subr.bf16.mxu0 0
        %992 = vmatpush1.bf16.msra.mxu0 0
        %993 = vmatprep.subr.bf16.mxu0 0
        %994 = vmatpush1.bf16.msra.mxu0 0
        %995 = vmatprep.subr.bf16.mxu0 0
        %996 = vmatpush1.bf16.msra.mxu0 0
        %997 = vmatprep.subr.bf16.mxu0 0
        %998 = vmatpush1.bf16.msra.mxu0 0
        %999 = vmatprep.subr.bf16.mxu0 0
        %1000 = vmatpush1.bf16.msra.mxu0 0
        %1001 = vmatprep.subr.bf16.mxu0 0
        %1002 = vmatpush1.bf16.msra.mxu0 0
        %1003 = vmatprep.subr.bf16.mxu0 0
        %1004 = vmatpush1.bf16.msra.mxu0 0
        %1005 = vmatprep.subr.bf16.mxu0 0
        %1006 = vmatpush1.bf16.msra.mxu0 0
        %1007 = vmatprep.subr.bf16.mxu0 0
        %1008 = vmatpush1.bf16.msra.mxu0 0
        %1009 = vmatprep.subr.bf16.mxu0 0
        %1010 = vmatpush1.bf16.msra.mxu0 0
        %1011 = vmatprep.mubr.bf16.mxu0 0
        %1012 = vmatmul.mubr.bf16.gmra.mrb[0].mxu0 %v973
        %v1013 = vpop.f32.mrb[0].mxu0
        %v1014 = vadd.f32 0.0, %v1013
        %v1015 = vpop.f32.mrb[0].mxu0
        %v1016 = vpop.f32.mrb[0].mxu0
        %v1017 = vpop.f32.mrb[0].mxu0
        %1018 = vdwg.mxu0
        %1019 = vrot.lane.b32.xlu0 %v694, 112
        %v1020 = vpop.permute.xlu0 %1019
        %v1022 = vsel %vm728, %v967, 0
        %v1025 = vsel %vm975, %v1020, 0
        %1027 = vmatprep.subr.bf16.mxu0 0
        %1028 = vmatpush1.bf16.msra.mxu0 %v1025
        %1029 = vmatprep.subr.bf16.mxu0 0
        %1030 = vmatpush1.bf16.msra.mxu0 0
        %1031 = vmatprep.subr.bf16.mxu0 0
        %1032 = vmatpush1.bf16.msra.mxu0 0
        %1033 = vmatprep.subr.bf16.mxu0 0
        %1034 = vmatpush1.bf16.msra.mxu0 0
        %1035 = vmatprep.subr.bf16.mxu0 0
        %1036 = vmatpush1.bf16.msra.mxu0 0
        %1037 = vmatprep.subr.bf16.mxu0 0
        %1038 = vmatpush1.bf16.msra.mxu0 0
        %1039 = vmatprep.subr.bf16.mxu0 0
        %1040 = vmatpush1.bf16.msra.mxu0 0
        %1041 = vmatprep.subr.bf16.mxu0 0
        %1042 = vmatpush1.bf16.msra.mxu0 0
        %1043 = vmatprep.subr.bf16.mxu0 0
        %1044 = vmatpush1.bf16.msra.mxu0 0
        %1045 = vmatprep.subr.bf16.mxu0 0
        %1046 = vmatpush1.bf16.msra.mxu0 0
        %1047 = vmatprep.subr.bf16.mxu0 0
        %1048 = vmatpush1.bf16.msra.mxu0 0
        %1049 = vmatprep.subr.bf16.mxu0 0
        %1050 = vmatpush1.bf16.msra.mxu0 0
        %1051 = vmatprep.subr.bf16.mxu0 0
        %1052 = vmatpush1.bf16.msra.mxu0 0
        %1053 = vmatprep.subr.bf16.mxu0 0
        %1054 = vmatpush1.bf16.msra.mxu0 0
        %1055 = vmatprep.subr.bf16.mxu0 0
        %1056 = vmatpush1.bf16.msra.mxu0 0
        %1057 = vmatprep.subr.bf16.mxu0 0
        %1058 = vmatpush1.bf16.msra.mxu0 0
        %1059 = vmatprep.mubr.bf16.mxu0 0
        %1060 = vmatmul.mubr.bf16.gmra.mrb[0].mxu0 %v1022
        %v1061 = vpop.f32.mrb[0].mxu0
        %v1062 = vadd.f32 0.0, %v1061
        %v1063 = vpop.f32.mrb[0].mxu0
        %v1064 = vpop.f32.mrb[0].mxu0
        %v1065 = vpop.f32.mrb[0].mxu0
        %1066 = vdwg.mxu0
        %1067 = vrot.lane.b32.xlu0 %v695, 112
        %v1068 = vpop.permute.xlu0 %1067
        %v1070 = vsel %vm728, %v968, 0
        %v1073 = vsel %vm975, %v1068, 0
        %1075 = vmatprep.subr.bf16.mxu0 0
        %1076 = vmatpush1.bf16.msra.mxu0 %v1073
        %1077 = vmatprep.subr.bf16.mxu0 0
        %1078 = vmatpush1.bf16.msra.mxu0 0
        %1079 = vmatprep.subr.bf16.mxu0 0
        %1080 = vmatpush1.bf16.msra.mxu0 0
        %1081 = vmatprep.subr.bf16.mxu0 0
        %1082 = vmatpush1.bf16.msra.mxu0 0
        %1083 = vmatprep.subr.bf16.mxu0 0
        %1084 = vmatpush1.bf16.msra.mxu0 0
        %1085 = vmatprep.subr.bf16.mxu0 0
        %1086 = vmatpush1.bf16.msra.mxu0 0
        %1087 = vmatprep.subr.bf16.mxu0 0
        %1088 = vmatpush1.bf16.msra.mxu0 0
        %1089 = vmatprep.subr.bf16.mxu0 0
        %1090 = vmatpush1.bf16.msra.mxu0 0
        %1091 = vmatprep.subr.bf16.mxu0 0
        %1092 = vmatpush1.bf16.msra.mxu0 0
        %1093 = vmatprep.subr.bf16.mxu0 0
        %1094 = vmatpush1.bf16.msra.mxu0 0
        %1095 = vmatprep.subr.bf16.mxu0 0
        %1096 = vmatpush1.bf16.msra.mxu0 0
        %1097 = vmatprep.subr.bf16.mxu0 0
        %1098 = vmatpush1.bf16.msra.mxu0 0
        %1099 = vmatprep.subr.bf16.mxu0 0
        %1100 = vmatpush1.bf16.msra.mxu0 0
        %1101 = vmatprep.subr.bf16.mxu0 0
        %1102 = vmatpush1.bf16.msra.mxu0 0
        %1103 = vmatprep.subr.bf16.mxu0 0
        %1104 = vmatpush1.bf16.msra.mxu0 0
        %1105 = vmatprep.subr.bf16.mxu0 0
        %1106 = vmatpush1.bf16.msra.mxu0 0
        %1107 = vmatprep.mubr.bf16.mxu0 0
        %1108 = vmatmul.mubr.bf16.gmra.mrb[0].mxu0 %v1070
        %v1109 = vpop.f32.mrb[0].mxu0
        %v1110 = vadd.f32 0.0, %v1109
        %v1111 = vpop.f32.mrb[0].mxu0
        %v1112 = vpop.f32.mrb[0].mxu0
        %v1113 = vpop.f32.mrb[0].mxu0
        %1114 = vdwg.mxu0
        %1115 = vrot.lane.b32.xlu0 %v696, 112
        %v1116 = vpop.permute.xlu0 %1115
        %v1118 = vsel %vm728, %v969, 0
        %v1121 = vsel %vm975, %v1116, 0
        %1123 = vmatprep.subr.bf16.mxu0 0
        %1124 = vmatpush1.bf16.msra.mxu0 %v1121
        %1125 = vmatprep.subr.bf16.mxu0 0
        %1126 = vmatpush1.bf16.msra.mxu0 0
        %1127 = vmatprep.subr.bf16.mxu0 0
        %1128 = vmatpush1.bf16.msra.mxu0 0
        %1129 = vmatprep.subr.bf16.mxu0 0
        %1130 = vmatpush1.bf16.msra.mxu0 0
        %1131 = vmatprep.subr.bf16.mxu0 0
        %1132 = vmatpush1.bf16.msra.mxu0 0
        %1133 = vmatprep.subr.bf16.mxu0 0
        %1134 = vmatpush1.bf16.msra.mxu0 0
        %1135 = vmatprep.subr.bf16.mxu0 0
        %1136 = vmatpush1.bf16.msra.mxu0 0
        %1137 = vmatprep.subr.bf16.mxu0 0
        %1138 = vmatpush1.bf16.msra.mxu0 0
        %1139 = vmatprep.subr.bf16.mxu0 0
        %1140 = vmatpush1.bf16.msra.mxu0 0
        %1141 = vmatprep.subr.bf16.mxu0 0
        %1142 = vmatpush1.bf16.msra.mxu0 0
        %1143 = vmatprep.subr.bf16.mxu0 0
        %1144 = vmatpush1.bf16.msra.mxu0 0
        %1145 = vmatprep.subr.bf16.mxu0 0
        %1146 = vmatpush1.bf16.msra.mxu0 0
        %1147 = vmatprep.subr.bf16.mxu0 0
        %1148 = vmatpush1.bf16.msra.mxu0 0
        %1149 = vmatprep.subr.bf16.mxu0 0
        %1150 = vmatpush1.bf16.msra.mxu0 0
        %1151 = vmatprep.subr.bf16.mxu0 0
        %1152 = vmatpush1.bf16.msra.mxu0 0
        %1153 = vmatprep.subr.bf16.mxu0 0
        %1154 = vmatpush1.bf16.msra.mxu0 0
        %1155 = vmatprep.mubr.bf16.mxu0 0
        %1156 = vmatmul.mubr.bf16.gmra.mrb[0].mxu0 %v1118
        %v1157 = vpop.f32.mrb[0].mxu0
        %v1158 = vadd.f32 0.0, %v1157
        %v1159 = vpop.f32.mrb[0].mxu0
        %v1160 = vpop.f32.mrb[0].mxu0
        %v1161 = vpop.f32.mrb[0].mxu0
        %1162 = vdwg.mxu0
        %1164 = vrot.lane.b32.xlu0 %v1062, 8
        %v1165 = vpop.permute.xlu0 %1164
        %1168 = vrot.lane.b32.xlu0 %v1110, 16
        %v1169 = vpop.permute.xlu0 %1168
        %1172 = vrot.lane.b32.xlu0 %v1158, 24
        %v1173 = vpop.permute.xlu0 %1172
        %v1175 = vsel %vm728, %v1014, %v1165
        %vm1176 = vcmask 130048
        %v1177 = vsel %vm1176, %v1175, %v1169
        %vm1178 = vcmask 195584
        %v1179 = vsel %vm1178, %v1177, %v1173
        %v1180 = vpack.c.bf16 %v1179, %v1179
        %v1181 = vld [vmem:[%s567] sm:$0xf]
        %v1182 = vld [vmem:[%s567 + $0x4] sm:$0xf]
        %v1183 = vld [vmem:[%s567 + $0x8] sm:$0xf]
        %v1184 = vld [vmem:[%s567 + $0xc] sm:$0xf]
        %v1185 = vld [vmem:[%s570] sm:$0x1]
        %v1187 = vlaneseq
        %v1188 = vshrl.u32 %v1187, 7
        %v1189 = vsub.s32 0, %v1188
        %v1190 = vrot.slane %v1185, %v1189
        %v1196 = vunpack.c.l.b16 %v1181
        %v1197 = vunpack.c.l.b16 %v1182
        %v1198 = vunpack.c.l.b16 %v1183
        %v1199 = vunpack.c.l.b16 %v1184
        %v1200 = vpack.c.b16 %v1197, %v1196
        %v1201 = vpack.c.b16 %v1199, %v1198
        %v1205 = vsel %vm601, %v1180, 0
        %1207 = vmatprep.subr.bf16.mxu0 0
        %1208 = vmatpush1.bf16.msra.mxu0 %v1200
        %1209 = vmatprep.subr.bf16.mxu0 0
        %1210 = vmatpush1.bf16.msra.mxu0 %v1201
        %1211 = vmatprep.subr.bf16.mxu0 0
        %1212 = vmatpush1.bf16.msra.mxu0 0
        %1213 = vmatprep.subr.bf16.mxu0 0
        %1214 = vmatpush1.bf16.msra.mxu0 0
        %1215 = vmatprep.subr.bf16.mxu0 0
        %1216 = vmatpush1.bf16.msra.mxu0 0
        %1217 = vmatprep.subr.bf16.mxu0 0
        %1218 = vmatpush1.bf16.msra.mxu0 0
        %1219 = vmatprep.subr.bf16.mxu0 0
        %1220 = vmatpush1.bf16.msra.mxu0 0
        %1221 = vmatprep.subr.bf16.mxu0 0
        %1222 = vmatpush1.bf16.msra.mxu0 0
        %1223 = vmatprep.subr.bf16.mxu0 0
        %1224 = vmatpush1.bf16.msra.mxu0 0
        %1225 = vmatprep.subr.bf16.mxu0 0
        %1226 = vmatpush1.bf16.msra.mxu0 0
        %1227 = vmatprep.subr.bf16.mxu0 0
        %1228 = vmatpush1.bf16.msra.mxu0 0
        %1229 = vmatprep.subr.bf16.mxu0 0
        %1230 = vmatpush1.bf16.msra.mxu0 0
        %1231 = vmatprep.subr.bf16.mxu0 0
        %1232 = vmatpush1.bf16.msra.mxu0 0
        %1233 = vmatprep.subr.bf16.mxu0 0
        %1234 = vmatpush1.bf16.msra.mxu0 0
        %1235 = vmatprep.subr.bf16.mxu0 0
        %1236 = vmatpush1.bf16.msra.mxu0 0
        %1237 = vmatprep.subr.bf16.mxu0 0
        %1238 = vmatpush1.bf16.msra.mxu0 0
        %1239 = vmatprep.mubr.bf16.mxu0 0
        %1240 = vmatmul.mubr.bf16.gmra.mrb[0].mxu0 %v1205
        %v1241 = vpop.f32.mrb[0].mxu0
        %v1242 = vadd.f32 %v1190, %v1241
        %v1243 = vpop.f32.mrb[0].mxu0
        %v1244 = vpop.f32.mrb[0].mxu0
        %v1245 = vpop.f32.mrb[0].mxu0
        %1246 = vdwg.mxu0
        %v1247 = vadd.f32 %v622, %v1242
        %v1248 = vld [vmem:[%s573] sm:$0x1]
        %v1249 = vmul.f32 %v1247, %v1247
        %v1250 = vsel %vm601, %v1249, 0.0
        %1251 = vadd.xlane.f32.xlu0 %v1250
        %v1252 = vpop.xlane.xlu0 %1251
        %v1253 = vmul.f32 %v1252, 0.03125
        %v1254 = vrsqrt.pop %v1253
        %v1255 = vmul.f32 %v1253, %v1254
        %vm1256 = vcmp.eq.f32.partialorder %v1253, inf
        %v1257 = vsel %vm1256, %v1253, %v1255
        %vm1258 = vcmp.eq.f32.partialorder %v1253, 0.0
        %v1259 = vand.u32 %v1253, 2147483648
        %v1260 = vsel %vm1258, %v1259, %v1257
        %v1262 = vlaneseq
        %v1263 = vshrl.u32 %v1262, 7
        %v1264 = vsub.s32 0, %v1263
        %v1265 = vrot.slane %v1248, %v1264
        %v1267 = vmul.f32 %v1247, %v1265
        %v1268 = vadd.f32 %v1260, 1e-08
        %v1269 = vrcp.pop %v1268
        %v1270 = vmul.f32 %v1267, %v1269
        %v1271 = vpack.c.bf16 %v1270, %v1270
        %v1272 = vld [vmem:[%s578] sm:$0xf]
        %v1273 = vld [vmem:[%s578 + $0x4] sm:$0xf]
        %v1274 = vld [vmem:[%s578 + $0x8] sm:$0xf]
        %v1275 = vld [vmem:[%s578 + $0xc] sm:$0xf]
        %v1276 = vld [vmem:[%s581] sm:$0x1]
        %v1278 = vlaneseq
        %v1279 = vshrl.u32 %v1278, 7
        %v1280 = vsub.s32 0, %v1279
        %v1281 = vrot.slane %v1276, %v1280
        %v1287 = vunpack.c.l.b16 %v1272
        %v1288 = vunpack.c.l.b16 %v1273
        %v1289 = vunpack.c.l.b16 %v1274
        %v1290 = vunpack.c.l.b16 %v1275
        %v1291 = vpack.c.b16 %v1288, %v1287
        %v1292 = vpack.c.b16 %v1290, %v1289
        %v1296 = vsel %vm601, %v1271, 0
        %1298 = vmatprep.subr.bf16.mxu0 0
        %1299 = vmatpush1.bf16.msra.mxu0 %v1291
        %1300 = vmatprep.subr.bf16.mxu0 0
        %1301 = vmatpush1.bf16.msra.mxu0 %v1292
        %1302 = vmatprep.subr.bf16.mxu0 0
        %1303 = vmatpush1.bf16.msra.mxu0 0
        %1304 = vmatprep.subr.bf16.mxu0 0
        %1305 = vmatpush1.bf16.msra.mxu0 0
        %1306 = vmatprep.subr.bf16.mxu0 0
        %1307 = vmatpush1.bf16.msra.mxu0 0
        %1308 = vmatprep.subr.bf16.mxu0 0
        %1309 = vmatpush1.bf16.msra.mxu0 0
        %1310 = vmatprep.subr.bf16.mxu0 0
        %1311 = vmatpush1.bf16.msra.mxu0 0
        %1312 = vmatprep.subr.bf16.mxu0 0
        %1313 = vmatpush1.bf16.msra.mxu0 0
        %1314 = vmatprep.subr.bf16.mxu0 0
        %1315 = vmatpush1.bf16.msra.mxu0 0
        %1316 = vmatprep.subr.bf16.mxu0 0
        %1317 = vmatpush1.bf16.msra.mxu0 0
        %1318 = vmatprep.subr.bf16.mxu0 0
        %1319 = vmatpush1.bf16.msra.mxu0 0
        %1320 = vmatprep.subr.bf16.mxu0 0
        %1321 = vmatpush1.bf16.msra.mxu0 0
        %1322 = vmatprep.subr.bf16.mxu0 0
        %1323 = vmatpush1.bf16.msra.mxu0 0
        %1324 = vmatprep.subr.bf16.mxu0 0
        %1325 = vmatpush1.bf16.msra.mxu0 0
        %1326 = vmatprep.subr.bf16.mxu0 0
        %1327 = vmatpush1.bf16.msra.mxu0 0
        %1328 = vmatprep.subr.bf16.mxu0 0
        %1329 = vmatpush1.bf16.msra.mxu0 0
        %1330 = vmatprep.mubr.bf16.mxu0 0
        %1331 = vmatmul.mubr.bf16.gmra.mrb[0].mxu0 %v1296
        %v1332 = vpop.f32.mrb[0].mxu0
        %v1333 = vadd.f32 %v1281, %v1332
        %v1334 = vpop.f32.mrb[0].mxu0
        %v1335 = vpop.f32.mrb[0].mxu0
        %v1336 = vpop.f32.mrb[0].mxu0
        %1337 = vdwg.mxu0
        %v1338 = vmul.f32 %v1333, %v1333
        %v1339 = vmul.f32 %v1333, %v1338
        %v1340 = vmul.f32 %v1339, 0.044715
        %v1341 = vadd.f32 %v1333, %v1340
        %v1342 = vmul.f32 %v1341, 0.7978846
        %v1343 = vtanh.pop %v1342
        %v1344 = vadd.f32 %v1343, 1.0
        %v1345 = vmul.f32 %v1344, 0.5
        %v1346 = vmul.f32 %v1333, %v1345
        %v1347 = vpack.c.bf16 %v1346, %v1346
        %v1348 = vld [vmem:[%s586] sm:$0xf]
        %v1349 = vld [vmem:[%s586 + $0x4] sm:$0xf]
        %v1350 = vld [vmem:[%s586 + $0x8] sm:$0xf]
        %v1351 = vld [vmem:[%s586 + $0xc] sm:$0xf]
        %v1352 = vld [vmem:[%s586 + $0x10] sm:$0xf]
        %v1353 = vld [vmem:[%s586 + $0x14] sm:$0xf]
        %v1354 = vld [vmem:[%s586 + $0x18] sm:$0xf]
        %v1355 = vld [vmem:[%s586 + $0x1c] sm:$0xf]
        %v1356 = vld [vmem:[%s586 + $0x20] sm:$0xf]
        %v1357 = vld [vmem:[%s586 + $0x24] sm:$0xf]
        %v1358 = vld [vmem:[%s586 + $0x28] sm:$0xf]
        %v1359 = vld [vmem:[%s586 + $0x2c] sm:$0xf]
        %v1360 = vld [vmem:[%s586 + $0x30] sm:$0xf]
        %v1361 = vld [vmem:[%s586 + $0x34] sm:$0xf]
        %v1362 = vld [vmem:[%s586 + $0x38] sm:$0xf]
        %v1363 = vld [vmem:[%s586 + $0x3c] sm:$0xf]
        %v1364 = vld [vmem:[%s589] sm:$0x1]
        %v1366 = vlaneseq
        %v1367 = vshrl.u32 %v1366, 7
        %v1368 = vsub.s32 0, %v1367
        %v1369 = vrot.slane %v1364, %v1368
        %v1387 = vunpack.c.l.b16 %v1348
        %v1388 = vunpack.c.l.b16 %v1349
        %v1389 = vunpack.c.l.b16 %v1350
        %v1390 = vunpack.c.l.b16 %v1351
        %v1391 = vunpack.c.l.b16 %v1352
        %v1392 = vunpack.c.l.b16 %v1353
        %v1393 = vunpack.c.l.b16 %v1354
        %v1394 = vunpack.c.l.b16 %v1355
        %v1395 = vunpack.c.l.b16 %v1356
        %v1396 = vunpack.c.l.b16 %v1357
        %v1397 = vunpack.c.l.b16 %v1358
        %v1398 = vunpack.c.l.b16 %v1359
        %v1399 = vunpack.c.l.b16 %v1360
        %v1400 = vunpack.c.l.b16 %v1361
        %v1401 = vunpack.c.l.b16 %v1362
        %v1402 = vunpack.c.l.b16 %v1363
        %v1403 = vpack.c.b16 %v1388, %v1387
        %v1404 = vpack.c.b16 %v1390, %v1389
        %v1405 = vpack.c.b16 %v1392, %v1391
        %v1406 = vpack.c.b16 %v1394, %v1393
        %v1407 = vpack.c.b16 %v1396, %v1395
        %v1408 = vpack.c.b16 %v1398, %v1397
        %v1409 = vpack.c.b16 %v1400, %v1399
        %v1410 = vpack.c.b16 %v1402, %v1401
        %1419 = vmatprep.subr.bf16.mxu0 0
        %1420 = vmatpush1.bf16.msra.mxu0 %v1403
        %1421 = vmatprep.subr.bf16.mxu0 0
        %1422 = vmatpush1.bf16.msra.mxu0 %v1404
        %1423 = vmatprep.subr.bf16.mxu0 0
        %1424 = vmatpush1.bf16.msra.mxu0 %v1405
        %1425 = vmatprep.subr.bf16.mxu0 0
        %1426 = vmatpush1.bf16.msra.mxu0 %v1406
        %1427 = vmatprep.subr.bf16.mxu0 0
        %1428 = vmatpush1.bf16.msra.mxu0 %v1407
        %1429 = vmatprep.subr.bf16.mxu0 0
        %1430 = vmatpush1.bf16.msra.mxu0 %v1408
        %1431 = vmatprep.subr.bf16.mxu0 0
        %1432 = vmatpush1.bf16.msra.mxu0 %v1409
        %1433 = vmatprep.subr.bf16.mxu0 0
        %1434 = vmatpush1.bf16.msra.mxu0 %v1410
        %1435 = vmatprep.subr.bf16.mxu0 0
        %1436 = vmatpush1.bf16.msra.mxu0 0
        %1437 = vmatprep.subr.bf16.mxu0 0
        %1438 = vmatpush1.bf16.msra.mxu0 0
        %1439 = vmatprep.subr.bf16.mxu0 0
        %1440 = vmatpush1.bf16.msra.mxu0 0
        %1441 = vmatprep.subr.bf16.mxu0 0
        %1442 = vmatpush1.bf16.msra.mxu0 0
        %1443 = vmatprep.subr.bf16.mxu0 0
        %1444 = vmatpush1.bf16.msra.mxu0 0
        %1445 = vmatprep.subr.bf16.mxu0 0
        %1446 = vmatpush1.bf16.msra.mxu0 0
        %1447 = vmatprep.subr.bf16.mxu0 0
        %1448 = vmatpush1.bf16.msra.mxu0 0
        %1449 = vmatprep.subr.bf16.mxu0 0
        %1450 = vmatpush1.bf16.msra.mxu0 0
        %1451 = vmatprep.mubr.bf16.mxu0 0
        %1452 = vmatmul.mubr.bf16.gmra.mrb[0].mxu0 %v1347
        %v1453 = vpop.f32.mrb[0].mxu0
        %v1454 = vadd.f32 %v1369, %v1453
        %v1455 = vpop.f32.mrb[0].mxu0
        %v1456 = vpop.f32.mrb[0].mxu0
        %v1457 = vpop.f32.mrb[0].mxu0
        %1458 = vdwg.mxu0
        %v1459 = vadd.f32 %v1270, %v1454
        %p1460 = scmp.lt.s32.totalorder %s31, 1
        // Predicated region
        $region73: #{tpu_custom_call.1} parent=67 // pred_check
          %p1461 = pneg %p1460
        $region74: #{tpu_custom_call.1} parent=67 // pred_check_branch
          %1463 = sbr.rel (%p1461) target = $region76
        $region75: #{tpu_custom_call.1} parent=67 // pred_region
          %1464 = vst.msk [vmem:[%s545] sm:$0xff] %vm601, %v1459
        $region76: #{tpu_custom_call.1} parent=67 // pred_fallthru
          _
        %p1465 = scmp.eq.s32.totalorder %s31, 1
        // Predicated region
        $region77: #{tpu_custom_call.1} parent=67 // pred_check
          %p1466 = pneg %p1465
        $region78: #{tpu_custom_call.1} parent=67 // pred_check_branch
          %1468 = sbr.rel (%p1466) target = $region80
        $region79: #{tpu_custom_call.1} parent=67 // pred_region
          %v1469 = vld [vmem:[%s2] sm:$0x1]
          %v1470 = vmul.f32 %v1459, %v1459
          %v1471 = vsel %vm601, %v1470, 0.0
          %1472 = vadd.xlane.f32.xlu0 %v1471
          %v1473 = vpop.xlane.xlu0 %1472
          %v1474 = vmul.f32 %v1473, 0.03125
          %v1475 = vrsqrt.pop %v1474
          %v1476 = vmul.f32 %v1474, %v1475
          %vm1477 = vcmp.eq.f32.partialorder %v1474, inf
          %v1478 = vsel %vm1477, %v1474, %v1476
          %vm1479 = vcmp.eq.f32.partialorder %v1474, 0.0
          %v1480 = vand.u32 %v1474, 2147483648
          %v1481 = vsel %vm1479, %v1480, %v1478
          %v1483 = vlaneseq
          %v1484 = vshrl.u32 %v1483, 7
          %v1485 = vsub.s32 0, %v1484
          %v1486 = vrot.slane %v1469, %v1485
          %v1488 = vmul.f32 %v1459, %v1486
          %v1489 = vadd.f32 %v1481, 1e-08
          %v1490 = vrcp.pop %v1489
          %v1491 = vmul.f32 %v1488, %v1490
          %1492 = vst.msk [vmem:[%s545] sm:$0xff] %vm601, %v1491
        $region80: #{tpu_custom_call.1} parent=67 // pred_fallthru
          _
        %s1493 = sand.u32 %s353, 1
        %s1494 = scalar_lea.sflag [#allocation3], %s1493
        %s1495 = sand.u32 %s353, 1
        %s1496 = smul.addr %s1495, 8
        %s1497 = scalar_lea.vmem [#allocation2], %s1496
        // Predicated region
        $region81: #{tpu_custom_call.1} parent=67 // pred_check
          %p1498 = pneg %p363
        $region82: #{tpu_custom_call.1} parent=67 // pred_check_branch
          %1500 = sbr.rel (%p1498) target = $region84
        $region83: #{tpu_custom_call.1} parent=67 // pred_region
          %s1502 = ssub.s32 128, 128
          %1503 = vsyncadd %s1494, %s1502
          %s1504 = smul.addr %s30, 128
          %s1505 = scalar_lea.hbm %s12, %s1504
          %s1507 = sshll.u32 %s1497, 4
          %s1508 = int_to_ptr.vmem [resolvable:$true] %s1507
          %1510 = dma.vmem_to_hbm [thread:$0]  %s1508, 128, %s1505, %s1494
        $region84: #{tpu_custom_call.1} parent=67 // pred_fallthru
          _
      $region68: #{tpu_custom_call.1} parent=5 // pred_fallthru
        _
      %p1511 = scmp.le.s32.totalorder 2, %s21
      // Predicated region
      $region85: #{tpu_custom_call.1} parent=5 // pred_check
        %p1512 = pneg %p1511
      $region86: #{tpu_custom_call.1} parent=5 // pred_check_branch
        %1514 = sbr.rel (%p1512) target = $region88
      $region87: #{tpu_custom_call.1} parent=5 // pred_region
        %s1515 = ssub.s32 %s21, 2
        // Predicated region
        $region89: #{tpu_custom_call.1} parent=87 // pred_check
          %p1516 = pneg %p369
        $region90: #{tpu_custom_call.1} parent=87 // pred_check_branch
          %1518 = sbr.rel (%p1516) target = $region92
        $region91: #{tpu_custom_call.1} parent=87 // pred_region
          %s1519 = sand.u32 %s354, 1
          %s1520 = scalar_lea.sflag [#allocation3], %s1519
          %s1521 = sand.u32 %s354, 1
          %s1522 = smul.addr %s1521, 8
          %s1523 = scalar_lea.vmem [#allocation2], %s1522
          %1524 = dma.done %s1520, 128
        $region92: #{tpu_custom_call.1} parent=87 // pred_fallthru
          _
      $region88: #{tpu_custom_call.1} parent=5 // pred_fallthru
        _
    $region6: #{tpu_custom_call.1} parent=1 // loop_footer
      %s25 = sadd.s32 1, %s21
    $region7: #{tpu_custom_call.1} parent=1 // loop_footer_branch
      %20 = sbr.rel target = $region3
    $region8: #{tpu_custom_call.1} parent=1 // loop_exit
      _
    %1525 = vsyncpa [#allocation3], 1
    %s1526 = scalar_lea.sflag [#allocation3], 1
    %1527 = vsyncpa %s1526, 1

</llo_original>
